<compile_context>
chip_gen: v7x
topology: tpu7x:2x2x1
jax: 0.10.0
libtpu: 0.0.40
codegen_flags: <defaults>
</compile_context>

<pallas_src>
import jax
import jax.numpy as jnp
from jax import lax
from jax.experimental import pallas as pl
from jax.experimental.pallas import tpu as pltpu


def _resnet_lstm_kernel(x_ref,       # (T, BB, D)  time-major batch block
                        wih_ref,     # (D, 8H)     [W_ih_f^T | W_ih_b^T]
                        bias_ref,    # (1, 8H)     [b_f | b_b]  (b_ih + b_hh per dir)
                        whh_ref,     # (2H, 8H)    block-diagonal [W_hh_f^T ; W_hh_b^T]
                        wfr_ref,     # (1, 2H)     frame head weight
                        bfr_ref,     # (1, 1)      frame head bias
                        wsq_ref,     # (1, 2H)     seq head weight
                        bsq_ref,     # (1, 1)      seq head bias
                        frame_ref,   # (BB, T)     frame probs for this batch block
                        seq_ref):    # (BB, 1)     seq probs for this batch block
    T, BB, D = x_ref.shape
    H8 = wih_ref.shape[1]
    H = H8 // 8
    H4 = 4 * H

    # ---- input projection for the whole block: ONE MXU matmul ----
    # x is time-major, so collapsing (T, BB) keeps per-step rows contiguous
    # and 8-sublane aligned (BB == 8).
    x2 = x_ref[...].reshape(T * BB, D)                                   # (T*BB, D)
    gx = jnp.dot(x2, wih_ref[...],
                 preferred_element_type=jnp.float32) + bias_ref[...]     # (T*BB, 8H)

    # ---- loop-invariant loads (hoisted out of the unrolled loop) ----
    w_hh = whh_ref[...]                                                  # (2H, 8H)
    w_fr = wfr_ref[...]                                                  # (1, 2H)
    w_fr_f = w_fr[:, :H]
    w_fr_b = w_fr[:, H:]

    # ---- fused, fully unrolled bidirectional recurrence (states in vregs) ----
    h_f = jnp.zeros((BB, H), jnp.float32)
    c_f = jnp.zeros((BB, H), jnp.float32)
    h_b = jnp.zeros((BB, H), jnp.float32)
    c_b = jnp.zeros((BB, H), jnp.float32)

    fwd_logits = []   # frame-head forward contribution for time t
    bwd_logits = []   # frame-head backward contribution for time T-1-t

    for t in range(T):
        s = T - 1 - t

        # single MXU push covering both directions (block-diagonal W_hh)
        h_cat = jnp.concatenate([h_f, h_b], axis=1)                      # (BB, 2H)
        gh = jnp.dot(h_cat, w_hh, preferred_element_type=jnp.float32)    # (BB, 8H)

        g_f = gh[:, :H4] + gx[t * BB:(t + 1) * BB, :H4]   # fwd gates @ time t
        g_b = gh[:, H4:] + gx[s * BB:(s + 1) * BB, H4:]   # bwd gates @ time s

        # activations on the full 4H-wide vector (EUP), combine via lane slices
        sg_f = jax.nn.sigmoid(g_f)
        th_f = jnp.tanh(g_f)
        c_f = sg_f[:, H:2 * H] * c_f + sg_f[:, :H] * th_f[:, 2 * H:3 * H]
        h_f = sg_f[:, 3 * H:] * jnp.tanh(c_f)

        sg_b = jax.nn.sigmoid(g_b)
        th_b = jnp.tanh(g_b)
        c_b = sg_b[:, H:2 * H] * c_b + sg_b[:, :H] * th_b[:, 2 * H:3 * H]
        h_b = sg_b[:, 3 * H:] * jnp.tanh(c_b)

        # frame head: VPU multiply + XLU lane reduce (off the recurrence path)
        fwd_logits.append(jnp.sum(h_f * w_fr_f, axis=1, keepdims=True))  # (BB, 1)
        bwd_logits.append(jnp.sum(h_b * w_fr_b, axis=1, keepdims=True))  # (BB, 1)

    # Frame probs: bwd_logits[k] belongs to time T-1-k -> reverse the list.
    frame_logits = (jnp.concatenate(fwd_logits, axis=1)
                    + jnp.concatenate(bwd_logits[::-1], axis=1)
                    + bfr_ref[...])                                       # (BB, T)
    frame_ref[...] = jax.nn.sigmoid(frame_logits)

    # Sequence head on [h_n forward-final ; h_n backward-final].
    w_sq = wsq_ref[...]
    seq_logit = (jnp.sum(h_f * w_sq[:, :H], axis=1, keepdims=True)
                 + jnp.sum(h_b * w_sq[:, H:], axis=1, keepdims=True)
                 + bsq_ref[...])                                          # (BB, 1)
    seq_ref[...] = jax.nn.sigmoid(seq_logit)


def init_params(key, input_dim, hidden_dim):
    ks = jax.random.split(key, 12)
    s = 1.0 / jnp.sqrt(jnp.float32(hidden_dim))

    def u(k, shape):
        return jax.random.uniform(k, shape, jnp.float32, -s, s)

    H4 = 4 * hidden_dim
    return dict(
        w_ih_f=u(ks[0], (H4, input_dim)),
        w_hh_f=u(ks[1], (H4, hidden_dim)),
        b_ih_f=u(ks[2], (H4,)),
        b_hh_f=u(ks[3], (H4,)),
        w_ih_b=u(ks[4], (H4, input_dim)),
        w_hh_b=u(ks[5], (H4, hidden_dim)),
        b_ih_b=u(ks[6], (H4,)),
        b_hh_b=u(ks[7], (H4,)),
        w_frame=u(ks[8], (1, 2 * hidden_dim)),
        b_frame=u(ks[9], (1,)),
        w_seq=u(ks[10], (1, 2 * hidden_dim)),
        b_seq=u(ks[11], (1,)),
    )


def resnet_lstm_forward(x, p, *, block_b=8):
    """x: (B, T, D) float32 -> (frame_probs (B, T), seq_probs (B,))."""
    assert block_b % 8 == 0, "block_b must be a multiple of the f32 sublane tile (8)"
    B, T, D = x.shape
    H = p["w_hh_f"].shape[1]
    H4, H8 = 4 * H, 8 * H

    # Pad batch to a multiple of block_b (padded rows are discarded at the end).
    BB = block_b
    B_pad = ((B + BB - 1) // BB) * BB
    if B_pad != B:
        x = jnp.concatenate([x, jnp.zeros((B_pad - B, T, D), x.dtype)], axis=0)
    # Time-major layout so every per-step slab inside the kernel is contiguous.
    x_tm = jnp.transpose(x, (1, 0, 2))                       # (T, B_pad, D)

    # Fused input-projection weight: (D, 8H) = [W_ih_f^T | W_ih_b^T]
    w_ih_cat = jnp.concatenate([p["w_ih_f"].T, p["w_ih_b"].T], axis=1)
    bias_cat = jnp.concatenate([p["b_ih_f"] + p["b_hh_f"],
                                p["b_ih_b"] + p["b_hh_b"]]).reshape(1, H8)
    # Block-diagonal recurrent weight: (2H, 8H)
    z = jnp.zeros((H, H4), jnp.float32)
    w_hh_bd = jnp.concatenate(
        [jnp.concatenate([p["w_hh_f"].T, z], axis=1),
         jnp.concatenate([z, p["w_hh_b"].T], axis=1)], axis=0)

    args = (x_tm, w_ih_cat, bias_cat, w_hh_bd,
            p["w_frame"], p["b_frame"].reshape(1, 1),
            p["w_seq"], p["b_seq"].reshape(1, 1))

    def const_spec(a):
        return pl.BlockSpec(a.shape, lambda b, _n=a.ndim: (0,) * _n)

    in_specs = ([pl.BlockSpec((T, BB, D), lambda b: (0, b, 0))]
                + [const_spec(a) for a in args[1:]])

    frame, seq = pl.pallas_call(
        _resnet_lstm_kernel,
        out_shape=(jax.ShapeDtypeStruct((B_pad, T), jnp.float32),
                   jax.ShapeDtypeStruct((B_pad, 1), jnp.float32)),
        grid=(B_pad // BB,),
        in_specs=in_specs,
        out_specs=(pl.BlockSpec((BB, T), lambda b: (b, 0)),
                   pl.BlockSpec((BB, 1), lambda b: (b, 0))),
        compiler_params=pltpu.CompilerParams(
            dimension_semantics=("parallel",)),
    )(*args)

    return frame[:B], seq[:B, 0]


def reference_forward(x, p):
    """Pure-JAX reference reproducing nn.LSTM(bidirectional) + heads."""
    B, T, D = x.shape
    H = p["w_hh_f"].shape[1]

    def run_dir(wih, whh, bih, bhh, reverse):
        def cell(carry, x_t):
            h, c = carry
            g = x_t @ wih.T + bih + h @ whh.T + bhh
            i, f, gg, o = jnp.split(g, 4, axis=-1)
            i = jax.nn.sigmoid(i)
            f = jax.nn.sigmoid(f)
            gg = jnp.tanh(gg)
            o = jax.nn.sigmoid(o)
            c = f * c + i * gg
            h = o * jnp.tanh(c)
            return (h, c), h

        xs = jnp.transpose(x, (1, 0, 2))
        if reverse:
            xs = xs[::-1]
        init = (jnp.zeros((B, H), jnp.float32), jnp.zeros((B, H), jnp.float32))
        (h_fin, _), hs = lax.scan(cell, init, xs)
        if reverse:
            hs = hs[::-1]
        return hs, h_fin

    hs_f, hf_fin = run_dir(p["w_ih_f"], p["w_hh_f"], p["b_ih_f"], p["b_hh_f"], False)
    hs_b, hb_fin = run_dir(p["w_ih_b"], p["w_hh_b"], p["b_ih_b"], p["b_hh_b"], True)
    lstm_out = jnp.transpose(jnp.concatenate([hs_f, hs_b], axis=-1), (1, 0, 2))
    frame = jax.nn.sigmoid((lstm_out @ p["w_frame"].T + p["b_frame"])[..., 0])
    seq_rep = jnp.concatenate([hf_fin, hb_fin], axis=-1)
    seq = jax.nn.sigmoid((seq_rep @ p["w_seq"].T + p["b_seq"])[..., 0])
    return frame, seq


if __name__ == "__main__":
    B, T, INPUT_DIM, HIDDEN_DIM = 4, 8, 32, 32

    key = jax.random.PRNGKey(0)
    k_x, k_p = jax.random.split(key)
    x = jax.random.normal(k_x, (B, T, INPUT_DIM), dtype=jnp.float32)
    params = init_params(k_p, INPUT_DIM, HIDDEN_DIM)

    frame_probs, seq_probs = resnet_lstm_forward(x, params)
    jax.block_until_ready((frame_probs, seq_probs))

    frame_ref, seq_ref = reference_forward(x, params)
    assert frame_probs.shape == (B, T) and seq_probs.shape == (B,)
    assert jnp.allclose(frame_probs, frame_ref, rtol=1e-3, atol=1e-4)
    assert jnp.allclose(seq_probs, seq_ref, rtol=1e-3, atol=1e-4)

    print("KERNEL_OK")
</pallas_src>

<mosaic_0001>
module attributes {stable_mosaic.version = 11 : i64} {
  func.func @_resnet_lstm_kernel(%arg0: i32, %arg1: memref<8x8x32xf32, #tpu.memory_space<vmem>>, %arg2: memref<32x256xf32, #tpu.memory_space<vmem>>, %arg3: memref<1x256xf32, #tpu.memory_space<vmem>>, %arg4: memref<64x256xf32, #tpu.memory_space<vmem>>, %arg5: memref<1x64xf32, #tpu.memory_space<vmem>>, %arg6: memref<1x1xf32, #tpu.memory_space<vmem>>, %arg7: memref<1x64xf32, #tpu.memory_space<vmem>>, %arg8: memref<1x1xf32, #tpu.memory_space<vmem>>, %arg9: memref<8x8xf32, #tpu.memory_space<vmem>>, %arg10: memref<8x1xf32, #tpu.memory_space<vmem>>) attributes {dimension_semantics = [#tpu.dimension_semantics<parallel>], iteration_bounds = array<i64: 1>, scalar_prefetch = 0 : i64, scratch_operands = 0 : i64, tpu.core_type = #tpu.core_type<tc>, window_params = [{transform_indices = @transform_0, window_bounds = array<i64: 8, 8, 32>}, {pipeline_mode = #tpu.pipeline_mode<synchronous>, transform_indices = @transform_1, window_bounds = array<i64: 32, 256>}, {pipeline_mode = #tpu.pipeline_mode<synchronous>, transform_indices = @transform_2, window_bounds = array<i64: 1, 256>}, {pipeline_mode = #tpu.pipeline_mode<synchronous>, transform_indices = @transform_3, window_bounds = array<i64: 64, 256>}, {pipeline_mode = #tpu.pipeline_mode<synchronous>, transform_indices = @transform_4, window_bounds = array<i64: 1, 64>}, {pipeline_mode = #tpu.pipeline_mode<synchronous>, transform_indices = @transform_5, window_bounds = array<i64: 1, 1>}, {pipeline_mode = #tpu.pipeline_mode<synchronous>, transform_indices = @transform_6, window_bounds = array<i64: 1, 64>}, {pipeline_mode = #tpu.pipeline_mode<synchronous>, transform_indices = @transform_7, window_bounds = array<i64: 1, 1>}, {transform_indices = @transform_8, window_bounds = array<i64: 8, 8>}, {transform_indices = @transform_9, window_bounds = array<i64: 8, 1>}]} {
    %c0 = arith.constant 0 : index
    %c0_0 = arith.constant 0 : index
    %c0_1 = arith.constant 0 : index
    %0 = vector.load %arg1[%c0, %c0_0, %c0_1] : memref<8x8x32xf32, #tpu.memory_space<vmem>>, vector<8x8x32xf32>
    %1 = vector.shape_cast %0 : vector<8x8x32xf32> to vector<64x32xf32>
    %c0_2 = arith.constant 0 : index
    %c0_3 = arith.constant 0 : index
    %2 = vector.load %arg2[%c0_2, %c0_3] : memref<32x256xf32, #tpu.memory_space<vmem>>, vector<32x256xf32>
    %cst = arith.constant dense<0.000000e+00> : vector<64x256xf32>
    %3 = tpu.matmul %1, %2, %cst {dimension_numbers = #tpu.dot_dimension_numbers<[1], [0], [0], [1], [0, 0, 1, 1], [], []>} : vector<64x32xf32>, vector<32x256xf32>, vector<64x256xf32> -> vector<64x256xf32>
    %c0_4 = arith.constant 0 : index
    %c0_5 = arith.constant 0 : index
    %4 = vector.load %arg3[%c0_4, %c0_5] : memref<1x256xf32, #tpu.memory_space<vmem>>, vector<1x256xf32>
    %5 = vector.broadcast %4 : vector<1x256xf32> to vector<64x256xf32>
    %6 = arith.addf %3, %5 : vector<64x256xf32>
    %c0_6 = arith.constant 0 : index
    %c0_7 = arith.constant 0 : index
    %7 = vector.load %arg4[%c0_6, %c0_7] : memref<64x256xf32, #tpu.memory_space<vmem>>, vector<64x256xf32>
    %c0_8 = arith.constant 0 : index
    %c0_9 = arith.constant 0 : index
    %8 = vector.load %arg5[%c0_8, %c0_9] : memref<1x64xf32, #tpu.memory_space<vmem>>, vector<1x64xf32>
    %9 = vector.extract_strided_slice %8 {offsets = [0, 0], sizes = [1, 32], strides = [1, 1]} : vector<1x64xf32> to vector<1x32xf32>
    %10 = vector.extract_strided_slice %8 {offsets = [0, 32], sizes = [1, 32], strides = [1, 1]} : vector<1x64xf32> to vector<1x32xf32>
    %cst_10 = arith.constant 0.000000e+00 : f32
    %11 = vector.broadcast %cst_10 : f32 to vector<8x32xf32>
    %cst_11 = arith.constant 0.000000e+00 : f32
    %12 = vector.broadcast %cst_11 : f32 to vector<8x32xf32>
    %cst_12 = arith.constant 0.000000e+00 : f32
    %13 = vector.broadcast %cst_12 : f32 to vector<8x32xf32>
    %cst_13 = arith.constant 0.000000e+00 : f32
    %14 = vector.broadcast %cst_13 : f32 to vector<8x32xf32>
    %15 = tpu.concatenate %11, %13 in 1 : vector<8x32xf32>, vector<8x32xf32> -> vector<8x64xf32>
    %cst_14 = arith.constant dense<0.000000e+00> : vector<8x256xf32>
    %16 = tpu.matmul %15, %7, %cst_14 {dimension_numbers = #tpu.dot_dimension_numbers<[1], [0], [0], [1], [0, 0, 1, 1], [], []>} : vector<8x64xf32>, vector<64x256xf32>, vector<8x256xf32> -> vector<8x256xf32>
    %17 = vector.extract_strided_slice %16 {offsets = [0, 0], sizes = [8, 128], strides = [1, 1]} : vector<8x256xf32> to vector<8x128xf32>
    %18 = vector.extract_strided_slice %6 {offsets = [0, 0], sizes = [8, 128], strides = [1, 1]} : vector<64x256xf32> to vector<8x128xf32>
    %19 = arith.addf %17, %18 : vector<8x128xf32>
    %20 = vector.extract_strided_slice %16 {offsets = [0, 128], sizes = [8, 128], strides = [1, 1]} : vector<8x256xf32> to vector<8x128xf32>
    %21 = vector.extract_strided_slice %6 {offsets = [56, 128], sizes = [8, 128], strides = [1, 1]} : vector<64x256xf32> to vector<8x128xf32>
    %22 = arith.addf %20, %21 : vector<8x128xf32>
    %23 = arith.negf %19 : vector<8x128xf32>
    %24 = math.exp %23 : vector<8x128xf32>
    %cst_15 = arith.constant 1.000000e+00 : f32
    %25 = vector.broadcast %cst_15 : f32 to vector<8x128xf32>
    %26 = arith.addf %25, %24 : vector<8x128xf32>
    %27 = arith.divf %25, %26 : vector<8x128xf32>
    %28 = math.tanh %19 : vector<8x128xf32>
    %29 = vector.extract_strided_slice %27 {offsets = [0, 32], sizes = [8, 32], strides = [1, 1]} : vector<8x128xf32> to vector<8x32xf32>
    %30 = arith.mulf %29, %12 : vector<8x32xf32>
    %31 = vector.extract_strided_slice %27 {offsets = [0, 0], sizes = [8, 32], strides = [1, 1]} : vector<8x128xf32> to vector<8x32xf32>
    %32 = vector.extract_strided_slice %28 {offsets = [0, 64], sizes = [8, 32], strides = [1, 1]} : vector<8x128xf32> to vector<8x32xf32>
    %33 = arith.mulf %31, %32 : vector<8x32xf32>
    %34 = arith.addf %30, %33 : vector<8x32xf32>
    %35 = vector.extract_strided_slice %27 {offsets = [0, 96], sizes = [8, 32], strides = [1, 1]} : vector<8x128xf32> to vector<8x32xf32>
    %36 = math.tanh %34 : vector<8x32xf32>
    %37 = arith.mulf %35, %36 : vector<8x32xf32>
    %38 = arith.negf %22 : vector<8x128xf32>
    %39 = math.exp %38 : vector<8x128xf32>
    %cst_16 = arith.constant 1.000000e+00 : f32
    %40 = vector.broadcast %cst_16 : f32 to vector<8x128xf32>
    %41 = arith.addf %40, %39 : vector<8x128xf32>
    %42 = arith.divf %40, %41 : vector<8x128xf32>
    %43 = math.tanh %22 : vector<8x128xf32>
    %44 = vector.extract_strided_slice %42 {offsets = [0, 32], sizes = [8, 32], strides = [1, 1]} : vector<8x128xf32> to vector<8x32xf32>
    %45 = arith.mulf %44, %14 : vector<8x32xf32>
    %46 = vector.extract_strided_slice %42 {offsets = [0, 0], sizes = [8, 32], strides = [1, 1]} : vector<8x128xf32> to vector<8x32xf32>
    %47 = vector.extract_strided_slice %43 {offsets = [0, 64], sizes = [8, 32], strides = [1, 1]} : vector<8x128xf32> to vector<8x32xf32>
    %48 = arith.mulf %46, %47 : vector<8x32xf32>
    %49 = arith.addf %45, %48 : vector<8x32xf32>
    %50 = vector.extract_strided_slice %42 {offsets = [0, 96], sizes = [8, 32], strides = [1, 1]} : vector<8x128xf32> to vector<8x32xf32>
    %51 = math.tanh %49 : vector<8x32xf32>
    %52 = arith.mulf %50, %51 : vector<8x32xf32>
    %53 = vector.broadcast %9 : vector<1x32xf32> to vector<8x32xf32>
    %54 = arith.mulf %37, %53 : vector<8x32xf32>
    %cst_17 = arith.constant dense<0.000000e+00> : vector<8xf32>
    %55 = vector.multi_reduction <add>, %54, %cst_17 [1] : vector<8x32xf32> to vector<8xf32>
    %56 = vector.shape_cast %55 : vector<8xf32> to vector<8x1xf32>
    %57 = vector.broadcast %10 : vector<1x32xf32> to vector<8x32xf32>
    %58 = arith.mulf %52, %57 : vector<8x32xf32>
    %cst_18 = arith.constant dense<0.000000e+00> : vector<8xf32>
    %59 = vector.multi_reduction <add>, %58, %cst_18 [1] : vector<8x32xf32> to vector<8xf32>
    %60 = vector.shape_cast %59 : vector<8xf32> to vector<8x1xf32>
    %61 = tpu.concatenate %37, %52 in 1 : vector<8x32xf32>, vector<8x32xf32> -> vector<8x64xf32>
    %cst_19 = arith.constant dense<0.000000e+00> : vector<8x256xf32>
    %62 = tpu.matmul %61, %7, %cst_19 {dimension_numbers = #tpu.dot_dimension_numbers<[1], [0], [0], [1], [0, 0, 1, 1], [], []>} : vector<8x64xf32>, vector<64x256xf32>, vector<8x256xf32> -> vector<8x256xf32>
    %63 = vector.extract_strided_slice %62 {offsets = [0, 0], sizes = [8, 128], strides = [1, 1]} : vector<8x256xf32> to vector<8x128xf32>
    %64 = vector.extract_strided_slice %6 {offsets = [8, 0], sizes = [8, 128], strides = [1, 1]} : vector<64x256xf32> to vector<8x128xf32>
    %65 = arith.addf %63, %64 : vector<8x128xf32>
    %66 = vector.extract_strided_slice %62 {offsets = [0, 128], sizes = [8, 128], strides = [1, 1]} : vector<8x256xf32> to vector<8x128xf32>
    %67 = vector.extract_strided_slice %6 {offsets = [48, 128], sizes = [8, 128], strides = [1, 1]} : vector<64x256xf32> to vector<8x128xf32>
    %68 = arith.addf %66, %67 : vector<8x128xf32>
    %69 = arith.negf %65 : vector<8x128xf32>
    %70 = math.exp %69 : vector<8x128xf32>
    %cst_20 = arith.constant 1.000000e+00 : f32
    %71 = vector.broadcast %cst_20 : f32 to vector<8x128xf32>
    %72 = arith.addf %71, %70 : vector<8x128xf32>
    %73 = arith.divf %71, %72 : vector<8x128xf32>
    %74 = math.tanh %65 : vector<8x128xf32>
    %75 = vector.extract_strided_slice %73 {offsets = [0, 32], sizes = [8, 32], strides = [1, 1]} : vector<8x128xf32> to vector<8x32xf32>
    %76 = arith.mulf %75, %34 : vector<8x32xf32>
    %77 = vector.extract_strided_slice %73 {offsets = [0, 0], sizes = [8, 32], strides = [1, 1]} : vector<8x128xf32> to vector<8x32xf32>
    %78 = vector.extract_strided_slice %74 {offsets = [0, 64], sizes = [8, 32], strides = [1, 1]} : vector<8x128xf32> to vector<8x32xf32>
    %79 = arith.mulf %77, %78 : vector<8x32xf32>
    %80 = arith.addf %76, %79 : vector<8x32xf32>
    %81 = vector.extract_strided_slice %73 {offsets = [0, 96], sizes = [8, 32], strides = [1, 1]} : vector<8x128xf32> to vector<8x32xf32>
    %82 = math.tanh %80 : vector<8x32xf32>
    %83 = arith.mulf %81, %82 : vector<8x32xf32>
    %84 = arith.negf %68 : vector<8x128xf32>
    %85 = math.exp %84 : vector<8x128xf32>
    %cst_21 = arith.constant 1.000000e+00 : f32
    %86 = vector.broadcast %cst_21 : f32 to vector<8x128xf32>
    %87 = arith.addf %86, %85 : vector<8x128xf32>
    %88 = arith.divf %86, %87 : vector<8x128xf32>
    %89 = math.tanh %68 : vector<8x128xf32>
    %90 = vector.extract_strided_slice %88 {offsets = [0, 32], sizes = [8, 32], strides = [1, 1]} : vector<8x128xf32> to vector<8x32xf32>
    %91 = arith.mulf %90, %49 : vector<8x32xf32>
    %92 = vector.extract_strided_slice %88 {offsets = [0, 0], sizes = [8, 32], strides = [1, 1]} : vector<8x128xf32> to vector<8x32xf32>
    %93 = vector.extract_strided_slice %89 {offsets = [0, 64], sizes = [8, 32], strides = [1, 1]} : vector<8x128xf32> to vector<8x32xf32>
    %94 = arith.mulf %92, %93 : vector<8x32xf32>
    %95 = arith.addf %91, %94 : vector<8x32xf32>
    %96 = vector.extract_strided_slice %88 {offsets = [0, 96], sizes = [8, 32], strides = [1, 1]} : vector<8x128xf32> to vector<8x32xf32>
    %97 = math.tanh %95 : vector<8x32xf32>
    %98 = arith.mulf %96, %97 : vector<8x32xf32>
    %99 = vector.broadcast %9 : vector<1x32xf32> to vector<8x32xf32>
    %100 = arith.mulf %83, %99 : vector<8x32xf32>
    %cst_22 = arith.constant dense<0.000000e+00> : vector<8xf32>
    %101 = vector.multi_reduction <add>, %100, %cst_22 [1] : vector<8x32xf32> to vector<8xf32>
    %102 = vector.shape_cast %101 : vector<8xf32> to vector<8x1xf32>
    %103 = vector.broadcast %10 : vector<1x32xf32> to vector<8x32xf32>
    %104 = arith.mulf %98, %103 : vector<8x32xf32>
    %cst_23 = arith.constant dense<0.000000e+00> : vector<8xf32>
    %105 = vector.multi_reduction <add>, %104, %cst_23 [1] : vector<8x32xf32> to vector<8xf32>
    %106 = vector.shape_cast %105 : vector<8xf32> to vector<8x1xf32>
    %107 = tpu.concatenate %83, %98 in 1 : vector<8x32xf32>, vector<8x32xf32> -> vector<8x64xf32>
    %cst_24 = arith.constant dense<0.000000e+00> : vector<8x256xf32>
    %108 = tpu.matmul %107, %7, %cst_24 {dimension_numbers = #tpu.dot_dimension_numbers<[1], [0], [0], [1], [0, 0, 1, 1], [], []>} : vector<8x64xf32>, vector<64x256xf32>, vector<8x256xf32> -> vector<8x256xf32>
    %109 = vector.extract_strided_slice %108 {offsets = [0, 0], sizes = [8, 128], strides = [1, 1]} : vector<8x256xf32> to vector<8x128xf32>
    %110 = vector.extract_strided_slice %6 {offsets = [16, 0], sizes = [8, 128], strides = [1, 1]} : vector<64x256xf32> to vector<8x128xf32>
    %111 = arith.addf %109, %110 : vector<8x128xf32>
    %112 = vector.extract_strided_slice %108 {offsets = [0, 128], sizes = [8, 128], strides = [1, 1]} : vector<8x256xf32> to vector<8x128xf32>
    %113 = vector.extract_strided_slice %6 {offsets = [40, 128], sizes = [8, 128], strides = [1, 1]} : vector<64x256xf32> to vector<8x128xf32>
    %114 = arith.addf %112, %113 : vector<8x128xf32>
    %115 = arith.negf %111 : vector<8x128xf32>
    %116 = math.exp %115 : vector<8x128xf32>
    %cst_25 = arith.constant 1.000000e+00 : f32
    %117 = vector.broadcast %cst_25 : f32 to vector<8x128xf32>
    %118 = arith.addf %117, %116 : vector<8x128xf32>
    %119 = arith.divf %117, %118 : vector<8x128xf32>
    %120 = math.tanh %111 : vector<8x128xf32>
    %121 = vector.extract_strided_slice %119 {offsets = [0, 32], sizes = [8, 32], strides = [1, 1]} : vector<8x128xf32> to vector<8x32xf32>
    %122 = arith.mulf %121, %80 : vector<8x32xf32>
    %123 = vector.extract_strided_slice %119 {offsets = [0, 0], sizes = [8, 32], strides = [1, 1]} : vector<8x128xf32> to vector<8x32xf32>
    %124 = vector.extract_strided_slice %120 {offsets = [0, 64], sizes = [8, 32], strides = [1, 1]} : vector<8x128xf32> to vector<8x32xf32>
    %125 = arith.mulf %123, %124 : vector<8x32xf32>
    %126 = arith.addf %122, %125 : vector<8x32xf32>
    %127 = vector.extract_strided_slice %119 {offsets = [0, 96], sizes = [8, 32], strides = [1, 1]} : vector<8x128xf32> to vector<8x32xf32>
    %128 = math.tanh %126 : vector<8x32xf32>
    %129 = arith.mulf %127, %128 : vector<8x32xf32>
    %130 = arith.negf %114 : vector<8x128xf32>
    %131 = math.exp %130 : vector<8x128xf32>
    %cst_26 = arith.constant 1.000000e+00 : f32
    %132 = vector.broadcast %cst_26 : f32 to vector<8x128xf32>
    %133 = arith.addf %132, %131 : vector<8x128xf32>
    %134 = arith.divf %132, %133 : vector<8x128xf32>
    %135 = math.tanh %114 : vector<8x128xf32>
    %136 = vector.extract_strided_slice %134 {offsets = [0, 32], sizes = [8, 32], strides = [1, 1]} : vector<8x128xf32> to vector<8x32xf32>
    %137 = arith.mulf %136, %95 : vector<8x32xf32>
    %138 = vector.extract_strided_slice %134 {offsets = [0, 0], sizes = [8, 32], strides = [1, 1]} : vector<8x128xf32> to vector<8x32xf32>
    %139 = vector.extract_strided_slice %135 {offsets = [0, 64], sizes = [8, 32], strides = [1, 1]} : vector<8x128xf32> to vector<8x32xf32>
    %140 = arith.mulf %138, %139 : vector<8x32xf32>
    %141 = arith.addf %137, %140 : vector<8x32xf32>
    %142 = vector.extract_strided_slice %134 {offsets = [0, 96], sizes = [8, 32], strides = [1, 1]} : vector<8x128xf32> to vector<8x32xf32>
    %143 = math.tanh %141 : vector<8x32xf32>
    %144 = arith.mulf %142, %143 : vector<8x32xf32>
    %145 = vector.broadcast %9 : vector<1x32xf32> to vector<8x32xf32>
    %146 = arith.mulf %129, %145 : vector<8x32xf32>
    %cst_27 = arith.constant dense<0.000000e+00> : vector<8xf32>
    %147 = vector.multi_reduction <add>, %146, %cst_27 [1] : vector<8x32xf32> to vector<8xf32>
    %148 = vector.shape_cast %147 : vector<8xf32> to vector<8x1xf32>
    %149 = vector.broadcast %10 : vector<1x32xf32> to vector<8x32xf32>
    %150 = arith.mulf %144, %149 : vector<8x32xf32>
    %cst_28 = arith.constant dense<0.000000e+00> : vector<8xf32>
    %151 = vector.multi_reduction <add>, %150, %cst_28 [1] : vector<8x32xf32> to vector<8xf32>
    %152 = vector.shape_cast %151 : vector<8xf32> to vector<8x1xf32>
    %153 = tpu.concatenate %129, %144 in 1 : vector<8x32xf32>, vector<8x32xf32> -> vector<8x64xf32>
    %cst_29 = arith.constant dense<0.000000e+00> : vector<8x256xf32>
    %154 = tpu.matmul %153, %7, %cst_29 {dimension_numbers = #tpu.dot_dimension_numbers<[1], [0], [0], [1], [0, 0, 1, 1], [], []>} : vector<8x64xf32>, vector<64x256xf32>, vector<8x256xf32> -> vector<8x256xf32>
    %155 = vector.extract_strided_slice %154 {offsets = [0, 0], sizes = [8, 128], strides = [1, 1]} : vector<8x256xf32> to vector<8x128xf32>
    %156 = vector.extract_strided_slice %6 {offsets = [24, 0], sizes = [8, 128], strides = [1, 1]} : vector<64x256xf32> to vector<8x128xf32>
    %157 = arith.addf %155, %156 : vector<8x128xf32>
    %158 = vector.extract_strided_slice %154 {offsets = [0, 128], sizes = [8, 128], strides = [1, 1]} : vector<8x256xf32> to vector<8x128xf32>
    %159 = vector.extract_strided_slice %6 {offsets = [32, 128], sizes = [8, 128], strides = [1, 1]} : vector<64x256xf32> to vector<8x128xf32>
    %160 = arith.addf %158, %159 : vector<8x128xf32>
    %161 = arith.negf %157 : vector<8x128xf32>
    %162 = math.exp %161 : vector<8x128xf32>
    %cst_30 = arith.constant 1.000000e+00 : f32
    %163 = vector.broadcast %cst_30 : f32 to vector<8x128xf32>
    %164 = arith.addf %163, %162 : vector<8x128xf32>
    %165 = arith.divf %163, %164 : vector<8x128xf32>
    %166 = math.tanh %157 : vector<8x128xf32>
    %167 = vector.extract_strided_slice %165 {offsets = [0, 32], sizes = [8, 32], strides = [1, 1]} : vector<8x128xf32> to vector<8x32xf32>
    %168 = arith.mulf %167, %126 : vector<8x32xf32>
    %169 = vector.extract_strided_slice %165 {offsets = [0, 0], sizes = [8, 32], strides = [1, 1]} : vector<8x128xf32> to vector<8x32xf32>
    %170 = vector.extract_strided_slice %166 {offsets = [0, 64], sizes = [8, 32], strides = [1, 1]} : vector<8x128xf32> to vector<8x32xf32>
    %171 = arith.mulf %169, %170 : vector<8x32xf32>
    %172 = arith.addf %168, %171 : vector<8x32xf32>
    %173 = vector.extract_strided_slice %165 {offsets = [0, 96], sizes = [8, 32], strides = [1, 1]} : vector<8x128xf32> to vector<8x32xf32>
    %174 = math.tanh %172 : vector<8x32xf32>
    %175 = arith.mulf %173, %174 : vector<8x32xf32>
    %176 = arith.negf %160 : vector<8x128xf32>
    %177 = math.exp %176 : vector<8x128xf32>
    %cst_31 = arith.constant 1.000000e+00 : f32
    %178 = vector.broadcast %cst_31 : f32 to vector<8x128xf32>
    %179 = arith.addf %178, %177 : vector<8x128xf32>
    %180 = arith.divf %178, %179 : vector<8x128xf32>
    %181 = math.tanh %160 : vector<8x128xf32>
    %182 = vector.extract_strided_slice %180 {offsets = [0, 32], sizes = [8, 32], strides = [1, 1]} : vector<8x128xf32> to vector<8x32xf32>
    %183 = arith.mulf %182, %141 : vector<8x32xf32>
    %184 = vector.extract_strided_slice %180 {offsets = [0, 0], sizes = [8, 32], strides = [1, 1]} : vector<8x128xf32> to vector<8x32xf32>
    %185 = vector.extract_strided_slice %181 {offsets = [0, 64], sizes = [8, 32], strides = [1, 1]} : vector<8x128xf32> to vector<8x32xf32>
    %186 = arith.mulf %184, %185 : vector<8x32xf32>
    %187 = arith.addf %183, %186 : vector<8x32xf32>
    %188 = vector.extract_strided_slice %180 {offsets = [0, 96], sizes = [8, 32], strides = [1, 1]} : vector<8x128xf32> to vector<8x32xf32>
    %189 = math.tanh %187 : vector<8x32xf32>
    %190 = arith.mulf %188, %189 : vector<8x32xf32>
    %191 = vector.broadcast %9 : vector<1x32xf32> to vector<8x32xf32>
    %192 = arith.mulf %175, %191 : vector<8x32xf32>
    %cst_32 = arith.constant dense<0.000000e+00> : vector<8xf32>
    %193 = vector.multi_reduction <add>, %192, %cst_32 [1] : vector<8x32xf32> to vector<8xf32>
    %194 = vector.shape_cast %193 : vector<8xf32> to vector<8x1xf32>
    %195 = vector.broadcast %10 : vector<1x32xf32> to vector<8x32xf32>
    %196 = arith.mulf %190, %195 : vector<8x32xf32>
    %cst_33 = arith.constant dense<0.000000e+00> : vector<8xf32>
    %197 = vector.multi_reduction <add>, %196, %cst_33 [1] : vector<8x32xf32> to vector<8xf32>
    %198 = vector.shape_cast %197 : vector<8xf32> to vector<8x1xf32>
    %199 = tpu.concatenate %175, %190 in 1 : vector<8x32xf32>, vector<8x32xf32> -> vector<8x64xf32>
    %cst_34 = arith.constant dense<0.000000e+00> : vector<8x256xf32>
    %200 = tpu.matmul %199, %7, %cst_34 {dimension_numbers = #tpu.dot_dimension_numbers<[1], [0], [0], [1], [0, 0, 1, 1], [], []>} : vector<8x64xf32>, vector<64x256xf32>, vector<8x256xf32> -> vector<8x256xf32>
    %201 = vector.extract_strided_slice %200 {offsets = [0, 0], sizes = [8, 128], strides = [1, 1]} : vector<8x256xf32> to vector<8x128xf32>
    %202 = vector.extract_strided_slice %6 {offsets = [32, 0], sizes = [8, 128], strides = [1, 1]} : vector<64x256xf32> to vector<8x128xf32>
    %203 = arith.addf %201, %202 : vector<8x128xf32>
    %204 = vector.extract_strided_slice %200 {offsets = [0, 128], sizes = [8, 128], strides = [1, 1]} : vector<8x256xf32> to vector<8x128xf32>
    %205 = vector.extract_strided_slice %6 {offsets = [24, 128], sizes = [8, 128], strides = [1, 1]} : vector<64x256xf32> to vector<8x128xf32>
    %206 = arith.addf %204, %205 : vector<8x128xf32>
    %207 = arith.negf %203 : vector<8x128xf32>
    %208 = math.exp %207 : vector<8x128xf32>
    %cst_35 = arith.constant 1.000000e+00 : f32
    %209 = vector.broadcast %cst_35 : f32 to vector<8x128xf32>
    %210 = arith.addf %209, %208 : vector<8x128xf32>
    %211 = arith.divf %209, %210 : vector<8x128xf32>
    %212 = math.tanh %203 : vector<8x128xf32>
    %213 = vector.extract_strided_slice %211 {offsets = [0, 32], sizes = [8, 32], strides = [1, 1]} : vector<8x128xf32> to vector<8x32xf32>
    %214 = arith.mulf %213, %172 : vector<8x32xf32>
    %215 = vector.extract_strided_slice %211 {offsets = [0, 0], sizes = [8, 32], strides = [1, 1]} : vector<8x128xf32> to vector<8x32xf32>
    %216 = vector.extract_strided_slice %212 {offsets = [0, 64], sizes = [8, 32], strides = [1, 1]} : vector<8x128xf32> to vector<8x32xf32>
    %217 = arith.mulf %215, %216 : vector<8x32xf32>
    %218 = arith.addf %214, %217 : vector<8x32xf32>
    %219 = vector.extract_strided_slice %211 {offsets = [0, 96], sizes = [8, 32], strides = [1, 1]} : vector<8x128xf32> to vector<8x32xf32>
    %220 = math.tanh %218 : vector<8x32xf32>
    %221 = arith.mulf %219, %220 : vector<8x32xf32>
    %222 = arith.negf %206 : vector<8x128xf32>
    %223 = math.exp %222 : vector<8x128xf32>
    %cst_36 = arith.constant 1.000000e+00 : f32
    %224 = vector.broadcast %cst_36 : f32 to vector<8x128xf32>
    %225 = arith.addf %224, %223 : vector<8x128xf32>
    %226 = arith.divf %224, %225 : vector<8x128xf32>
    %227 = math.tanh %206 : vector<8x128xf32>
    %228 = vector.extract_strided_slice %226 {offsets = [0, 32], sizes = [8, 32], strides = [1, 1]} : vector<8x128xf32> to vector<8x32xf32>
    %229 = arith.mulf %228, %187 : vector<8x32xf32>
    %230 = vector.extract_strided_slice %226 {offsets = [0, 0], sizes = [8, 32], strides = [1, 1]} : vector<8x128xf32> to vector<8x32xf32>
    %231 = vector.extract_strided_slice %227 {offsets = [0, 64], sizes = [8, 32], strides = [1, 1]} : vector<8x128xf32> to vector<8x32xf32>
    %232 = arith.mulf %230, %231 : vector<8x32xf32>
    %233 = arith.addf %229, %232 : vector<8x32xf32>
    %234 = vector.extract_strided_slice %226 {offsets = [0, 96], sizes = [8, 32], strides = [1, 1]} : vector<8x128xf32> to vector<8x32xf32>
    %235 = math.tanh %233 : vector<8x32xf32>
    %236 = arith.mulf %234, %235 : vector<8x32xf32>
    %237 = vector.broadcast %9 : vector<1x32xf32> to vector<8x32xf32>
    %238 = arith.mulf %221, %237 : vector<8x32xf32>
    %cst_37 = arith.constant dense<0.000000e+00> : vector<8xf32>
    %239 = vector.multi_reduction <add>, %238, %cst_37 [1] : vector<8x32xf32> to vector<8xf32>
    %240 = vector.shape_cast %239 : vector<8xf32> to vector<8x1xf32>
    %241 = vector.broadcast %10 : vector<1x32xf32> to vector<8x32xf32>
    %242 = arith.mulf %236, %241 : vector<8x32xf32>
    %cst_38 = arith.constant dense<0.000000e+00> : vector<8xf32>
    %243 = vector.multi_reduction <add>, %242, %cst_38 [1] : vector<8x32xf32> to vector<8xf32>
    %244 = vector.shape_cast %243 : vector<8xf32> to vector<8x1xf32>
    %245 = tpu.concatenate %221, %236 in 1 : vector<8x32xf32>, vector<8x32xf32> -> vector<8x64xf32>
    %cst_39 = arith.constant dense<0.000000e+00> : vector<8x256xf32>
    %246 = tpu.matmul %245, %7, %cst_39 {dimension_numbers = #tpu.dot_dimension_numbers<[1], [0], [0], [1], [0, 0, 1, 1], [], []>} : vector<8x64xf32>, vector<64x256xf32>, vector<8x256xf32> -> vector<8x256xf32>
    %247 = vector.extract_strided_slice %246 {offsets = [0, 0], sizes = [8, 128], strides = [1, 1]} : vector<8x256xf32> to vector<8x128xf32>
    %248 = vector.extract_strided_slice %6 {offsets = [40, 0], sizes = [8, 128], strides = [1, 1]} : vector<64x256xf32> to vector<8x128xf32>
    %249 = arith.addf %247, %248 : vector<8x128xf32>
    %250 = vector.extract_strided_slice %246 {offsets = [0, 128], sizes = [8, 128], strides = [1, 1]} : vector<8x256xf32> to vector<8x128xf32>
    %251 = vector.extract_strided_slice %6 {offsets = [16, 128], sizes = [8, 128], strides = [1, 1]} : vector<64x256xf32> to vector<8x128xf32>
    %252 = arith.addf %250, %251 : vector<8x128xf32>
    %253 = arith.negf %249 : vector<8x128xf32>
    %254 = math.exp %253 : vector<8x128xf32>
    %cst_40 = arith.constant 1.000000e+00 : f32
    %255 = vector.broadcast %cst_40 : f32 to vector<8x128xf32>
    %256 = arith.addf %255, %254 : vector<8x128xf32>
    %257 = arith.divf %255, %256 : vector<8x128xf32>
    %258 = math.tanh %249 : vector<8x128xf32>
    %259 = vector.extract_strided_slice %257 {offsets = [0, 32], sizes = [8, 32], strides = [1, 1]} : vector<8x128xf32> to vector<8x32xf32>
    %260 = arith.mulf %259, %218 : vector<8x32xf32>
    %261 = vector.extract_strided_slice %257 {offsets = [0, 0], sizes = [8, 32], strides = [1, 1]} : vector<8x128xf32> to vector<8x32xf32>
    %262 = vector.extract_strided_slice %258 {offsets = [0, 64], sizes = [8, 32], strides = [1, 1]} : vector<8x128xf32> to vector<8x32xf32>
    %263 = arith.mulf %261, %262 : vector<8x32xf32>
    %264 = arith.addf %260, %263 : vector<8x32xf32>
    %265 = vector.extract_strided_slice %257 {offsets = [0, 96], sizes = [8, 32], strides = [1, 1]} : vector<8x128xf32> to vector<8x32xf32>
    %266 = math.tanh %264 : vector<8x32xf32>
    %267 = arith.mulf %265, %266 : vector<8x32xf32>
    %268 = arith.negf %252 : vector<8x128xf32>
    %269 = math.exp %268 : vector<8x128xf32>
    %cst_41 = arith.constant 1.000000e+00 : f32
    %270 = vector.broadcast %cst_41 : f32 to vector<8x128xf32>
    %271 = arith.addf %270, %269 : vector<8x128xf32>
    %272 = arith.divf %270, %271 : vector<8x128xf32>
    %273 = math.tanh %252 : vector<8x128xf32>
    %274 = vector.extract_strided_slice %272 {offsets = [0, 32], sizes = [8, 32], strides = [1, 1]} : vector<8x128xf32> to vector<8x32xf32>
    %275 = arith.mulf %274, %233 : vector<8x32xf32>
    %276 = vector.extract_strided_slice %272 {offsets = [0, 0], sizes = [8, 32], strides = [1, 1]} : vector<8x128xf32> to vector<8x32xf32>
    %277 = vector.extract_strided_slice %273 {offsets = [0, 64], sizes = [8, 32], strides = [1, 1]} : vector<8x128xf32> to vector<8x32xf32>
    %278 = arith.mulf %276, %277 : vector<8x32xf32>
    %279 = arith.addf %275, %278 : vector<8x32xf32>
    %280 = vector.extract_strided_slice %272 {offsets = [0, 96], sizes = [8, 32], strides = [1, 1]} : vector<8x128xf32> to vector<8x32xf32>
    %281 = math.tanh %279 : vector<8x32xf32>
    %282 = arith.mulf %280, %281 : vector<8x32xf32>
    %283 = vector.broadcast %9 : vector<1x32xf32> to vector<8x32xf32>
    %284 = arith.mulf %267, %283 : vector<8x32xf32>
    %cst_42 = arith.constant dense<0.000000e+00> : vector<8xf32>
    %285 = vector.multi_reduction <add>, %284, %cst_42 [1] : vector<8x32xf32> to vector<8xf32>
    %286 = vector.shape_cast %285 : vector<8xf32> to vector<8x1xf32>
    %287 = vector.broadcast %10 : vector<1x32xf32> to vector<8x32xf32>
    %288 = arith.mulf %282, %287 : vector<8x32xf32>
    %cst_43 = arith.constant dense<0.000000e+00> : vector<8xf32>
    %289 = vector.multi_reduction <add>, %288, %cst_43 [1] : vector<8x32xf32> to vector<8xf32>
    %290 = vector.shape_cast %289 : vector<8xf32> to vector<8x1xf32>
    %291 = tpu.concatenate %267, %282 in 1 : vector<8x32xf32>, vector<8x32xf32> -> vector<8x64xf32>
    %cst_44 = arith.constant dense<0.000000e+00> : vector<8x256xf32>
    %292 = tpu.matmul %291, %7, %cst_44 {dimension_numbers = #tpu.dot_dimension_numbers<[1], [0], [0], [1], [0, 0, 1, 1], [], []>} : vector<8x64xf32>, vector<64x256xf32>, vector<8x256xf32> -> vector<8x256xf32>
    %293 = vector.extract_strided_slice %292 {offsets = [0, 0], sizes = [8, 128], strides = [1, 1]} : vector<8x256xf32> to vector<8x128xf32>
    %294 = vector.extract_strided_slice %6 {offsets = [48, 0], sizes = [8, 128], strides = [1, 1]} : vector<64x256xf32> to vector<8x128xf32>
    %295 = arith.addf %293, %294 : vector<8x128xf32>
    %296 = vector.extract_strided_slice %292 {offsets = [0, 128], sizes = [8, 128], strides = [1, 1]} : vector<8x256xf32> to vector<8x128xf32>
    %297 = vector.extract_strided_slice %6 {offsets = [8, 128], sizes = [8, 128], strides = [1, 1]} : vector<64x256xf32> to vector<8x128xf32>
    %298 = arith.addf %296, %297 : vector<8x128xf32>
    %299 = arith.negf %295 : vector<8x128xf32>
    %300 = math.exp %299 : vector<8x128xf32>
    %cst_45 = arith.constant 1.000000e+00 : f32
    %301 = vector.broadcast %cst_45 : f32 to vector<8x128xf32>
    %302 = arith.addf %301, %300 : vector<8x128xf32>
    %303 = arith.divf %301, %302 : vector<8x128xf32>
    %304 = math.tanh %295 : vector<8x128xf32>
    %305 = vector.extract_strided_slice %303 {offsets = [0, 32], sizes = [8, 32], strides = [1, 1]} : vector<8x128xf32> to vector<8x32xf32>
    %306 = arith.mulf %305, %264 : vector<8x32xf32>
    %307 = vector.extract_strided_slice %303 {offsets = [0, 0], sizes = [8, 32], strides = [1, 1]} : vector<8x128xf32> to vector<8x32xf32>
    %308 = vector.extract_strided_slice %304 {offsets = [0, 64], sizes = [8, 32], strides = [1, 1]} : vector<8x128xf32> to vector<8x32xf32>
    %309 = arith.mulf %307, %308 : vector<8x32xf32>
    %310 = arith.addf %306, %309 : vector<8x32xf32>
    %311 = vector.extract_strided_slice %303 {offsets = [0, 96], sizes = [8, 32], strides = [1, 1]} : vector<8x128xf32> to vector<8x32xf32>
    %312 = math.tanh %310 : vector<8x32xf32>
    %313 = arith.mulf %311, %312 : vector<8x32xf32>
    %314 = arith.negf %298 : vector<8x128xf32>
    %315 = math.exp %314 : vector<8x128xf32>
    %cst_46 = arith.constant 1.000000e+00 : f32
    %316 = vector.broadcast %cst_46 : f32 to vector<8x128xf32>
    %317 = arith.addf %316, %315 : vector<8x128xf32>
    %318 = arith.divf %316, %317 : vector<8x128xf32>
    %319 = math.tanh %298 : vector<8x128xf32>
    %320 = vector.extract_strided_slice %318 {offsets = [0, 32], sizes = [8, 32], strides = [1, 1]} : vector<8x128xf32> to vector<8x32xf32>
    %321 = arith.mulf %320, %279 : vector<8x32xf32>
    %322 = vector.extract_strided_slice %318 {offsets = [0, 0], sizes = [8, 32], strides = [1, 1]} : vector<8x128xf32> to vector<8x32xf32>
    %323 = vector.extract_strided_slice %319 {offsets = [0, 64], sizes = [8, 32], strides = [1, 1]} : vector<8x128xf32> to vector<8x32xf32>
    %324 = arith.mulf %322, %323 : vector<8x32xf32>
    %325 = arith.addf %321, %324 : vector<8x32xf32>
    %326 = vector.extract_strided_slice %318 {offsets = [0, 96], sizes = [8, 32], strides = [1, 1]} : vector<8x128xf32> to vector<8x32xf32>
    %327 = math.tanh %325 : vector<8x32xf32>
    %328 = arith.mulf %326, %327 : vector<8x32xf32>
    %329 = vector.broadcast %9 : vector<1x32xf32> to vector<8x32xf32>
    %330 = arith.mulf %313, %329 : vector<8x32xf32>
    %cst_47 = arith.constant dense<0.000000e+00> : vector<8xf32>
    %331 = vector.multi_reduction <add>, %330, %cst_47 [1] : vector<8x32xf32> to vector<8xf32>
    %332 = vector.shape_cast %331 : vector<8xf32> to vector<8x1xf32>
    %333 = vector.broadcast %10 : vector<1x32xf32> to vector<8x32xf32>
    %334 = arith.mulf %328, %333 : vector<8x32xf32>
    %cst_48 = arith.constant dense<0.000000e+00> : vector<8xf32>
    %335 = vector.multi_reduction <add>, %334, %cst_48 [1] : vector<8x32xf32> to vector<8xf32>
    %336 = vector.shape_cast %335 : vector<8xf32> to vector<8x1xf32>
    %337 = tpu.concatenate %313, %328 in 1 : vector<8x32xf32>, vector<8x32xf32> -> vector<8x64xf32>
    %cst_49 = arith.constant dense<0.000000e+00> : vector<8x256xf32>
    %338 = tpu.matmul %337, %7, %cst_49 {dimension_numbers = #tpu.dot_dimension_numbers<[1], [0], [0], [1], [0, 0, 1, 1], [], []>} : vector<8x64xf32>, vector<64x256xf32>, vector<8x256xf32> -> vector<8x256xf32>
    %339 = vector.extract_strided_slice %338 {offsets = [0, 0], sizes = [8, 128], strides = [1, 1]} : vector<8x256xf32> to vector<8x128xf32>
    %340 = vector.extract_strided_slice %6 {offsets = [56, 0], sizes = [8, 128], strides = [1, 1]} : vector<64x256xf32> to vector<8x128xf32>
    %341 = arith.addf %339, %340 : vector<8x128xf32>
    %342 = vector.extract_strided_slice %338 {offsets = [0, 128], sizes = [8, 128], strides = [1, 1]} : vector<8x256xf32> to vector<8x128xf32>
    %343 = vector.extract_strided_slice %6 {offsets = [0, 128], sizes = [8, 128], strides = [1, 1]} : vector<64x256xf32> to vector<8x128xf32>
    %344 = arith.addf %342, %343 : vector<8x128xf32>
    %345 = arith.negf %341 : vector<8x128xf32>
    %346 = math.exp %345 : vector<8x128xf32>
    %cst_50 = arith.constant 1.000000e+00 : f32
    %347 = vector.broadcast %cst_50 : f32 to vector<8x128xf32>
    %348 = arith.addf %347, %346 : vector<8x128xf32>
    %349 = arith.divf %347, %348 : vector<8x128xf32>
    %350 = math.tanh %341 : vector<8x128xf32>
    %351 = vector.extract_strided_slice %349 {offsets = [0, 32], sizes = [8, 32], strides = [1, 1]} : vector<8x128xf32> to vector<8x32xf32>
    %352 = arith.mulf %351, %310 : vector<8x32xf32>
    %353 = vector.extract_strided_slice %349 {offsets = [0, 0], sizes = [8, 32], strides = [1, 1]} : vector<8x128xf32> to vector<8x32xf32>
    %354 = vector.extract_strided_slice %350 {offsets = [0, 64], sizes = [8, 32], strides = [1, 1]} : vector<8x128xf32> to vector<8x32xf32>
    %355 = arith.mulf %353, %354 : vector<8x32xf32>
    %356 = arith.addf %352, %355 : vector<8x32xf32>
    %357 = vector.extract_strided_slice %349 {offsets = [0, 96], sizes = [8, 32], strides = [1, 1]} : vector<8x128xf32> to vector<8x32xf32>
    %358 = math.tanh %356 : vector<8x32xf32>
    %359 = arith.mulf %357, %358 : vector<8x32xf32>
    %360 = arith.negf %344 : vector<8x128xf32>
    %361 = math.exp %360 : vector<8x128xf32>
    %cst_51 = arith.constant 1.000000e+00 : f32
    %362 = vector.broadcast %cst_51 : f32 to vector<8x128xf32>
    %363 = arith.addf %362, %361 : vector<8x128xf32>
    %364 = arith.divf %362, %363 : vector<8x128xf32>
    %365 = math.tanh %344 : vector<8x128xf32>
    %366 = vector.extract_strided_slice %364 {offsets = [0, 32], sizes = [8, 32], strides = [1, 1]} : vector<8x128xf32> to vector<8x32xf32>
    %367 = arith.mulf %366, %325 : vector<8x32xf32>
    %368 = vector.extract_strided_slice %364 {offsets = [0, 0], sizes = [8, 32], strides = [1, 1]} : vector<8x128xf32> to vector<8x32xf32>
    %369 = vector.extract_strided_slice %365 {offsets = [0, 64], sizes = [8, 32], strides = [1, 1]} : vector<8x128xf32> to vector<8x32xf32>
    %370 = arith.mulf %368, %369 : vector<8x32xf32>
    %371 = arith.addf %367, %370 : vector<8x32xf32>
    %372 = vector.extract_strided_slice %364 {offsets = [0, 96], sizes = [8, 32], strides = [1, 1]} : vector<8x128xf32> to vector<8x32xf32>
    %373 = math.tanh %371 : vector<8x32xf32>
    %374 = arith.mulf %372, %373 : vector<8x32xf32>
    %375 = vector.broadcast %9 : vector<1x32xf32> to vector<8x32xf32>
    %376 = arith.mulf %359, %375 : vector<8x32xf32>
    %cst_52 = arith.constant dense<0.000000e+00> : vector<8xf32>
    %377 = vector.multi_reduction <add>, %376, %cst_52 [1] : vector<8x32xf32> to vector<8xf32>
    %378 = vector.shape_cast %377 : vector<8xf32> to vector<8x1xf32>
    %379 = vector.broadcast %10 : vector<1x32xf32> to vector<8x32xf32>
    %380 = arith.mulf %374, %379 : vector<8x32xf32>
    %cst_53 = arith.constant dense<0.000000e+00> : vector<8xf32>
    %381 = vector.multi_reduction <add>, %380, %cst_53 [1] : vector<8x32xf32> to vector<8xf32>
    %382 = vector.shape_cast %381 : vector<8xf32> to vector<8x1xf32>
    %383 = tpu.concatenate %56, %102, %148, %194, %240, %286, %332, %378 in 1 : vector<8x1xf32>, vector<8x1xf32>, vector<8x1xf32>, vector<8x1xf32>, vector<8x1xf32>, vector<8x1xf32>, vector<8x1xf32>, vector<8x1xf32> -> vector<8x8xf32>
    %384 = tpu.concatenate %382, %336, %290, %244, %198, %152, %106, %60 in 1 : vector<8x1xf32>, vector<8x1xf32>, vector<8x1xf32>, vector<8x1xf32>, vector<8x1xf32>, vector<8x1xf32>, vector<8x1xf32>, vector<8x1xf32> -> vector<8x8xf32>
    %385 = arith.addf %383, %384 : vector<8x8xf32>
    %c0_54 = arith.constant 0 : index
    %c0_55 = arith.constant 0 : index
    %386 = vector.load %arg6[%c0_54, %c0_55] : memref<1x1xf32, #tpu.memory_space<vmem>>, vector<1x1xf32>
    %387 = vector.broadcast %386 : vector<1x1xf32> to vector<8x8xf32>
    %388 = arith.addf %385, %387 : vector<8x8xf32>
    %389 = arith.negf %388 : vector<8x8xf32>
    %390 = math.exp %389 : vector<8x8xf32>
    %cst_56 = arith.constant 1.000000e+00 : f32
    %391 = vector.broadcast %cst_56 : f32 to vector<8x8xf32>
    %392 = arith.addf %391, %390 : vector<8x8xf32>
    %393 = arith.divf %391, %392 : vector<8x8xf32>
    %c0_57 = arith.constant 0 : index
    %c0_58 = arith.constant 0 : index
    %394 = vector.load %arg9[%c0_57, %c0_58] : memref<8x8xf32, #tpu.memory_space<vmem>>, vector<8x8xf32>
    tpu.vector_store %arg9[%c0_57, %c0_58], %393 {strides = array<i32>} : memref<8x8xf32, #tpu.memory_space<vmem>>, vector<8x8xf32>,
    %c0_59 = arith.constant 0 : index
    %c0_60 = arith.constant 0 : index
    %395 = vector.load %arg7[%c0_59, %c0_60] : memref<1x64xf32, #tpu.memory_space<vmem>>, vector<1x64xf32>
    %396 = vector.extract_strided_slice %395 {offsets = [0, 0], sizes = [1, 32], strides = [1, 1]} : vector<1x64xf32> to vector<1x32xf32>
    %397 = vector.broadcast %396 : vector<1x32xf32> to vector<8x32xf32>
    %398 = arith.mulf %359, %397 : vector<8x32xf32>
    %cst_61 = arith.constant dense<0.000000e+00> : vector<8xf32>
    %399 = vector.multi_reduction <add>, %398, %cst_61 [1] : vector<8x32xf32> to vector<8xf32>
    %400 = vector.shape_cast %399 : vector<8xf32> to vector<8x1xf32>
    %401 = vector.extract_strided_slice %395 {offsets = [0, 32], sizes = [1, 32], strides = [1, 1]} : vector<1x64xf32> to vector<1x32xf32>
    %402 = vector.broadcast %401 : vector<1x32xf32> to vector<8x32xf32>
    %403 = arith.mulf %374, %402 : vector<8x32xf32>
    %cst_62 = arith.constant dense<0.000000e+00> : vector<8xf32>
    %404 = vector.multi_reduction <add>, %403, %cst_62 [1] : vector<8x32xf32> to vector<8xf32>
    %405 = vector.shape_cast %404 : vector<8xf32> to vector<8x1xf32>
    %406 = arith.addf %400, %405 : vector<8x1xf32>
    %c0_63 = arith.constant 0 : index
    %c0_64 = arith.constant 0 : index
    %407 = vector.load %arg8[%c0_63, %c0_64] : memref<1x1xf32, #tpu.memory_space<vmem>>, vector<1x1xf32>
    %408 = vector.broadcast %407 : vector<1x1xf32> to vector<8x1xf32>
    %409 = arith.addf %406, %408 : vector<8x1xf32>
    %410 = arith.negf %409 : vector<8x1xf32>
    %411 = math.exp %410 : vector<8x1xf32>
    %cst_65 = arith.constant 1.000000e+00 : f32
    %412 = vector.broadcast %cst_65 : f32 to vector<8x1xf32>
    %413 = arith.addf %412, %411 : vector<8x1xf32>
    %414 = arith.divf %412, %413 : vector<8x1xf32>
    %c0_66 = arith.constant 0 : index
    %c0_67 = arith.constant 0 : index
    %415 = vector.load %arg10[%c0_66, %c0_67] : memref<8x1xf32, #tpu.memory_space<vmem>>, vector<8x1xf32>
    tpu.vector_store %arg10[%c0_66, %c0_67], %414 {strides = array<i32>} : memref<8x1xf32, #tpu.memory_space<vmem>>, vector<8x1xf32>,
    return
  }
  func.func @transform_0(%arg0: i32) -> (i32, i32, i32) {
    %c0_i32 = arith.constant 0 : i32
    %c0_i32_0 = arith.constant 0 : i32
    %c0_i32_1 = arith.constant 0 : i32
    return %c0_i32, %arg0, %c0_i32_0 : i32, i32, i32
  }
  func.func @transform_1(%arg0: i32) -> (i32, i32) {
    %c0_i32 = arith.constant 0 : i32
    %c0_i32_0 = arith.constant 0 : i32
    %c0_i32_1 = arith.constant 0 : i32
    return %c0_i32, %c0_i32_0 : i32, i32
  }
  func.func @transform_2(%arg0: i32) -> (i32, i32) {
    %c0_i32 = arith.constant 0 : i32
    %c0_i32_0 = arith.constant 0 : i32
    %c0_i32_1 = arith.constant 0 : i32
    return %c0_i32, %c0_i32_0 : i32, i32
  }
  func.func @transform_3(%arg0: i32) -> (i32, i32) {
    %c0_i32 = arith.constant 0 : i32
    %c0_i32_0 = arith.constant 0 : i32
    %c0_i32_1 = arith.constant 0 : i32
    return %c0_i32, %c0_i32_0 : i32, i32
  }
  func.func @transform_4(%arg0: i32) -> (i32, i32) {
    %c0_i32 = arith.constant 0 : i32
    %c0_i32_0 = arith.constant 0 : i32
    %c0_i32_1 = arith.constant 0 : i32
    return %c0_i32, %c0_i32_0 : i32, i32
  }
  func.func @transform_5(%arg0: i32) -> (i32, i32) {
    %c0_i32 = arith.constant 0 : i32
    %c0_i32_0 = arith.constant 0 : i32
    %c0_i32_1 = arith.constant 0 : i32
    return %c0_i32, %c0_i32_0 : i32, i32
  }
  func.func @transform_6(%arg0: i32) -> (i32, i32) {
    %c0_i32 = arith.constant 0 : i32
    %c0_i32_0 = arith.constant 0 : i32
    %c0_i32_1 = arith.constant 0 : i32
    return %c0_i32, %c0_i32_0 : i32, i32
  }
  func.func @transform_7(%arg0: i32) -> (i32, i32) {
    %c0_i32 = arith.constant 0 : i32
    %c0_i32_0 = arith.constant 0 : i32
    %c0_i32_1 = arith.constant 0 : i32
    return %c0_i32, %c0_i32_0 : i32, i32
  }
  func.func @transform_8(%arg0: i32) -> (i32, i32) {
    %c0_i32 = arith.constant 0 : i32
    %c0_i32_0 = arith.constant 0 : i32
    return %arg0, %c0_i32 : i32, i32
  }
  func.func @transform_9(%arg0: i32) -> (i32, i32) {
    %c0_i32 = arith.constant 0 : i32
    %c0_i32_0 = arith.constant 0 : i32
    return %arg0, %c0_i32 : i32, i32
  }
}

</mosaic_0001>

<llo_original>
// kernel: tpu_custom_call.1
$region0: #{tpu_custom_call.1}
  #allocation0 [shape = 'u32[]', space=smem, size = 0x4, offset = 0x4, fixed_abs, tag = 'smem constant byte address 0x4 - core index']
  #allocation1 [shape = 'u32[144,128]{1,0:T(1,128)}', space=vmem, size = 0x12000, scoped, tag = 'internal scratch']
  #allocation2 [shape = 'f32[1,1]{1,0:T(1,128)S(1)}', space=vmem, size = 0x200, scoped, tag = 'scoped memory for tpu_custom_call.1']
  #allocation3 [shape = 'f32[1,1]{1,0:T(1,128)S(1)}', space=vmem, size = 0x200, scoped, tag = 'scoped memory for tpu_custom_call.1']
  %s0 = inlined_call_operand.hbm [shape: f32[8,8,32], index: 0, kind: input, shape index: {}]
  %s1 = inlined_call_operand.hbm [shape: f32[32,256], index: 1, kind: input, shape index: {}]
  %s2 = inlined_call_operand.vmem [shape: f32[1,256], index: 2, kind: input, shape index: {}]
  %s3 = inlined_call_operand.hbm [shape: f32[64,256], index: 3, kind: input, shape index: {}]
  %s4 = inlined_call_operand.vmem [shape: f32[1,64], index: 4, kind: input, shape index: {}]
  %s5 = inlined_call_operand.<no memory space> [shape: f32[1,1], index: 5, kind: input, shape index: {}]
  %s6 = inlined_call_operand.vmem [shape: f32[1,64], index: 6, kind: input, shape index: {}]
  %s7 = inlined_call_operand.<no memory space> [shape: f32[1,1], index: 7, kind: input, shape index: {}]
  %s8 = inlined_call_operand.hbm [shape: f32[8,8], index: 8, kind: output, shape index: {0}]
  %s9 = inlined_call_operand.vmem [shape: f32[8,1], index: 9, kind: output, shape index: {1}]
  %10 = xla_tuple %s8, %s9
  %s11 = sld [smem:[#allocation0]]
  $region62: #{tpu_custom_call.1} parent=0
    _
  %s13 = ssub.s32 1, %s11
  %s14 = scalar_select 0, %s13, %s11
  %v15 = vstv %s5
  %16 = vst [vmem:[#allocation2] sm:$0x1] %v15
  %v17 = vstv %s7
  %18 = vst [vmem:[#allocation3] sm:$0x1] %v17
  $region1: #{tpu_custom_call.1} parent=0
    #allocation4 [shape = 'u8[32768]{0}', space=vmem, size = 0x8000, scoped, tag = 'input window, operand 0, single buffered']
    #allocation5 [shape = 's32[1]{0}', space=sflag, size = 0x4, scoped, tag = 'scoped memory for tpu_custom_call.1']
    #allocation6 [shape = 's32[1]{0}', space=sflag, size = 0x4, scoped, tag = 'scoped memory for tpu_custom_call.1']
    #allocation7 [shape = 'u8[32768]{0}', space=vmem, size = 0x8000, scoped, tag = 'input window, operand 1, single buffered']
    #allocation8 [shape = 's32[1]{0}', space=sflag, size = 0x4, scoped, tag = 'scoped memory for tpu_custom_call.1']
    #allocation9 [shape = 'u8[65536]{0}', space=vmem, size = 0x10000, scoped, tag = 'input window, operand 3, single buffered']
    #allocation10 [shape = 'u8[4096]{0}', space=vmem, size = 0x1000, scoped, tag = 'output window, operand 0, single buffered']
    %19 = vsyncpa [#allocation5], 0
    %20 = vsyncpa [#allocation8], 0
    %21 = vsyncpa [#allocation6], 0
    // Predicated region
    $region2: #{tpu_custom_call.1} parent=1 // pred_check
      _
    $region3: #{tpu_custom_call.1} parent=1 // pred_check_branch
      %23 = sbr.rel (0) target = $region5
    $region4: #{tpu_custom_call.1} parent=1 // pred_region
      %s25 = ssub.s32 1024, 1024
      %26 = vsyncadd [#allocation5], %s25
      %s27 = sshll.u32 [#allocation4], 4
      %s28 = int_to_ptr.vmem [resolvable:$true] %s27
      %33 = dma.hbm_to_vmem [thread:$0]  %s0, 1024, %s28, [#allocation5], 128, 128, 8
    $region5: #{tpu_custom_call.1} parent=1 // pred_fallthru
      _
    // Predicated region
    $region6: #{tpu_custom_call.1} parent=1 // pred_check
      _
    $region7: #{tpu_custom_call.1} parent=1 // pred_check_branch
      %35 = sbr.rel (0) target = $region9
    $region8: #{tpu_custom_call.1} parent=1 // pred_region
      %s37 = ssub.s32 1024, 1024
      %38 = vsyncadd [#allocation8], %s37
      %s39 = sshll.u32 [#allocation7], 4
      %s40 = int_to_ptr.vmem [resolvable:$true] %s39
      %45 = dma.hbm_to_vmem [thread:$0]  %s1, 1024, %s40, [#allocation8], 256, 256, 16
    $region9: #{tpu_custom_call.1} parent=1 // pred_fallthru
      _
    // Predicated region
    $region10: #{tpu_custom_call.1} parent=1 // pred_check
      _
    $region11: #{tpu_custom_call.1} parent=1 // pred_check_branch
      %47 = sbr.rel (0) target = $region13
    $region12: #{tpu_custom_call.1} parent=1 // pred_region
      _
    $region13: #{tpu_custom_call.1} parent=1 // pred_fallthru
      _
    // Predicated region
    $region14: #{tpu_custom_call.1} parent=1 // pred_check
      _
    $region15: #{tpu_custom_call.1} parent=1 // pred_check_branch
      %49 = sbr.rel (0) target = $region17
    $region16: #{tpu_custom_call.1} parent=1 // pred_region
      %s51 = ssub.s32 2048, 2048
      %52 = vsyncadd [#allocation8], %s51
      %s53 = sshll.u32 [#allocation9], 4
      %s54 = int_to_ptr.vmem [resolvable:$true] %s53
      %59 = dma.hbm_to_vmem [thread:$0]  %s3, 2048, %s54, [#allocation8], 256, 256, 16
    $region17: #{tpu_custom_call.1} parent=1 // pred_fallthru
      _
    // Predicated region
    $region18: #{tpu_custom_call.1} parent=1 // pred_check
      _
    $region19: #{tpu_custom_call.1} parent=1 // pred_check_branch
      %61 = sbr.rel (0) target = $region21
    $region20: #{tpu_custom_call.1} parent=1 // pred_region
      _
    $region21: #{tpu_custom_call.1} parent=1 // pred_fallthru
      _
    // Predicated region
    $region22: #{tpu_custom_call.1} parent=1 // pred_check
      _
    $region23: #{tpu_custom_call.1} parent=1 // pred_check_branch
      %63 = sbr.rel (0) target = $region25
    $region24: #{tpu_custom_call.1} parent=1 // pred_region
      _
    $region25: #{tpu_custom_call.1} parent=1 // pred_fallthru
      _
    // Predicated region
    $region26: #{tpu_custom_call.1} parent=1 // pred_check
      _
    $region27: #{tpu_custom_call.1} parent=1 // pred_check_branch
      %65 = sbr.rel (0) target = $region29
    $region28: #{tpu_custom_call.1} parent=1 // pred_region
      _
    $region29: #{tpu_custom_call.1} parent=1 // pred_fallthru
      _
    // Predicated region
    $region30: #{tpu_custom_call.1} parent=1 // pred_check
      _
    $region31: #{tpu_custom_call.1} parent=1 // pred_check_branch
      %67 = sbr.rel (0) target = $region33
    $region32: #{tpu_custom_call.1} parent=1 // pred_region
      _
    $region33: #{tpu_custom_call.1} parent=1 // pred_fallthru
      _
    // Predicated region
    $region34: #{tpu_custom_call.1} parent=1 // pred_check
      _
    $region35: #{tpu_custom_call.1} parent=1 // pred_check_branch
      %69 = sbr.rel (0) target = $region37
    $region36: #{tpu_custom_call.1} parent=1 // pred_region
      %70 = dma.done [#allocation5], 1024
    $region37: #{tpu_custom_call.1} parent=1 // pred_fallthru
      _
    // Predicated region
    $region38: #{tpu_custom_call.1} parent=1 // pred_check
      _
    $region39: #{tpu_custom_call.1} parent=1 // pred_check_branch
      %72 = sbr.rel (0) target = $region41
    $region40: #{tpu_custom_call.1} parent=1 // pred_region
      %73 = dma.done [#allocation8], 1024
    $region41: #{tpu_custom_call.1} parent=1 // pred_fallthru
      _
    // Predicated region
    $region42: #{tpu_custom_call.1} parent=1 // pred_check
      _
    $region43: #{tpu_custom_call.1} parent=1 // pred_check_branch
      %75 = sbr.rel (0) target = $region45
    $region44: #{tpu_custom_call.1} parent=1 // pred_region
      %76 = dma.done [#allocation8], 2048
    $region45: #{tpu_custom_call.1} parent=1 // pred_fallthru
      _
    %v77 = vld [vmem:[#allocation4] sm:$0xff]
    %v78 = vld [vmem:[#allocation4 + $0x8] sm:$0xff]
    %v79 = vld [vmem:[#allocation4 + $0x10] sm:$0xff]
    %v80 = vld [vmem:[#allocation4 + $0x18] sm:$0xff]
    %v81 = vld [vmem:[#allocation4 + $0x20] sm:$0xff]
    %v82 = vld [vmem:[#allocation4 + $0x28] sm:$0xff]
    %v83 = vld [vmem:[#allocation4 + $0x30] sm:$0xff]
    %v84 = vld [vmem:[#allocation4 + $0x38] sm:$0xff]
    %v85 = vld [vmem:[#allocation7] sm:$0xff]
    %v86 = vld [vmem:[#allocation7 + $0x8] sm:$0xff]
    %v87 = vld [vmem:[#allocation7 + $0x10] sm:$0xff]
    %v88 = vld [vmem:[#allocation7 + $0x18] sm:$0xff]
    %v89 = vld [vmem:[#allocation7 + $0x20] sm:$0xff]
    %v90 = vld [vmem:[#allocation7 + $0x28] sm:$0xff]
    %v91 = vld [vmem:[#allocation7 + $0x30] sm:$0xff]
    %v92 = vld [vmem:[#allocation7 + $0x38] sm:$0xff]
    %v93 = vld [vmem:[%s2] sm:$0x3]
    %v95 = vlaneseq
    %v96 = vshrl.u32 %v95, 7
    %v97 = vsub.s32 0, %v96
    %v98 = vrot.slane %v93, %v97
    %v99 = vlaneseq
    %v100 = vshrl.u32 %v99, 7
    %v101 = vsub.s32 1, %v100
    %v102 = vrot.slane %v93, %v101
    %vm105 = vcmask 261120
    %v107 = vsel %vm105, %v77, 0
    %v110 = vsel %vm105, %v78, 0
    %v113 = vsel %vm105, %v79, 0
    %v116 = vsel %vm105, %v80, 0
    %v119 = vsel %vm105, %v81, 0
    %v122 = vsel %vm105, %v82, 0
    %v125 = vsel %vm105, %v83, 0
    %v128 = vsel %vm105, %v84, 0
    %130 = vmatprep.subr.mxu0 %v86
    %131 = vmatpush1.msra.mxu0 %v85
    %132 = vmatprep.subr.mxu0 %v88
    %133 = vmatpush1.msra.mxu0 %v87
    %134 = vmatprep.subr.mxu0 %v90
    %135 = vmatpush1.msra.mxu0 %v89
    %136 = vmatprep.subr.mxu0 %v92
    %137 = vmatpush1.msra.mxu0 %v91
    %138 = vmatprep.subr.mxu0 0.0
    %139 = vmatpush1.msra.mxu0 0.0
    %140 = vmatprep.subr.mxu0 0.0
    %141 = vmatpush1.msra.mxu0 0.0
    %142 = vmatprep.subr.mxu0 0.0
    %143 = vmatpush1.msra.mxu0 0.0
    %144 = vmatprep.subr.mxu0 0.0
    %145 = vmatpush1.msra.mxu0 0.0
    %146 = vmatprep.subr.mxu0 0.0
    %147 = vmatpush1.msra.mxu0 0.0
    %148 = vmatprep.subr.mxu0 0.0
    %149 = vmatpush1.msra.mxu0 0.0
    %150 = vmatprep.subr.mxu0 0.0
    %151 = vmatpush1.msra.mxu0 0.0
    %152 = vmatprep.subr.mxu0 0.0
    %153 = vmatpush1.msra.mxu0 0.0
    %154 = vmatprep.subr.mxu0 0.0
    %155 = vmatpush1.msra.mxu0 0.0
    %156 = vmatprep.subr.mxu0 0.0
    %157 = vmatpush1.msra.mxu0 0.0
    %158 = vmatprep.subr.mxu0 0.0
    %159 = vmatpush1.msra.mxu0 0.0
    %160 = vmatprep.subr.mxu0 0.0
    %161 = vmatpush1.msra.mxu0 0.0
    %162 = vmatprep.subr.mxu0 0.0
    %163 = vmatpush1.msra.mxu0 0.0
    %164 = vmatprep.subr.mxu0 0.0
    %165 = vmatpush1.msra.mxu0 0.0
    %166 = vmatprep.subr.mxu0 0.0
    %167 = vmatpush1.msra.mxu0 0.0
    %168 = vmatprep.subr.mxu0 0.0
    %169 = vmatpush1.msra.mxu0 0.0
    %170 = vmatprep.subr.mxu0 0.0
    %171 = vmatpush1.msra.mxu0 0.0
    %172 = vmatprep.subr.mxu0 0.0
    %173 = vmatpush1.msra.mxu0 0.0
    %174 = vmatprep.subr.mxu0 0.0
    %175 = vmatpush1.msra.mxu0 0.0
    %176 = vmatprep.subr.mxu0 0.0
    %177 = vmatpush1.msra.mxu0 0.0
    %178 = vmatprep.subr.mxu0 0.0
    %179 = vmatpush1.msra.mxu0 0.0
    %180 = vmatprep.subr.mxu0 0.0
    %181 = vmatpush1.msra.mxu0 0.0
    %182 = vmatprep.subr.mxu0 0.0
    %183 = vmatpush1.msra.mxu0 0.0
    %184 = vmatprep.subr.mxu0 0.0
    %185 = vmatpush1.msra.mxu0 0.0
    %186 = vmatprep.subr.mxu0 0.0
    %187 = vmatpush1.msra.mxu0 0.0
    %188 = vmatprep.subr.mxu0 0.0
    %189 = vmatpush1.msra.mxu0 0.0
    %190 = vmatprep.subr.mxu0 0.0
    %191 = vmatpush1.msra.mxu0 0.0
    %192 = vmatprep.subr.mxu0 0.0
    %193 = vmatpush1.msra.mxu0 0.0
    %194 = vmatprep.mubr.f32.mxu0 0.0
    %195 = vmatmul.mubr.f32.gmra.mrb[0].mxu0 %v107
    %v196 = vpop.f32.mrb[0].mxu0
    %v197 = vadd.f32 %v98, %v196
    %v198 = vpop.f32.mrb[0].mxu0
    %v199 = vadd.f32 %v102, %v198
    %200 = vmatprep.mubr.f32.mxu0 0.0
    %201 = vmatmul.mubr.f32.gmra.mrb[0].mxu0 %v110
    %v202 = vpop.f32.mrb[0].mxu0
    %v203 = vadd.f32 %v98, %v202
    %v204 = vpop.f32.mrb[0].mxu0
    %v205 = vadd.f32 %v102, %v204
    %206 = vmatprep.mubr.f32.mxu0 0.0
    %207 = vmatmul.mubr.f32.gmra.mrb[0].mxu0 %v113
    %v208 = vpop.f32.mrb[0].mxu0
    %v209 = vadd.f32 %v98, %v208
    %v210 = vpop.f32.mrb[0].mxu0
    %v211 = vadd.f32 %v102, %v210
    %212 = vmatprep.mubr.f32.mxu0 0.0
    %213 = vmatmul.mubr.f32.gmra.mrb[0].mxu0 %v116
    %v214 = vpop.f32.mrb[0].mxu0
    %v215 = vadd.f32 %v98, %v214
    %v216 = vpop.f32.mrb[0].mxu0
    %v217 = vadd.f32 %v102, %v216
    %218 = vmatprep.mubr.f32.mxu0 0.0
    %219 = vmatmul.mubr.f32.gmra.mrb[0].mxu0 %v119
    %v220 = vpop.f32.mrb[0].mxu0
    %v221 = vadd.f32 %v98, %v220
    %v222 = vpop.f32.mrb[0].mxu0
    %v223 = vadd.f32 %v102, %v222
    %224 = vmatprep.mubr.f32.mxu0 0.0
    %225 = vmatmul.mubr.f32.gmra.mrb[0].mxu0 %v122
    %v226 = vpop.f32.mrb[0].mxu0
    %v227 = vadd.f32 %v98, %v226
    %v228 = vpop.f32.mrb[0].mxu0
    %v229 = vadd.f32 %v102, %v228
    %230 = vmatprep.mubr.f32.mxu0 0.0
    %231 = vmatmul.mubr.f32.gmra.mrb[0].mxu0 %v125
    %v232 = vpop.f32.mrb[0].mxu0
    %v233 = vadd.f32 %v98, %v232
    %v234 = vpop.f32.mrb[0].mxu0
    %v235 = vadd.f32 %v102, %v234
    %236 = vmatprep.mubr.f32.mxu0 0.0
    %237 = vmatmul.mubr.f32.gmra.mrb[0].mxu0 %v128
    %v238 = vpop.f32.mrb[0].mxu0
    %v239 = vadd.f32 %v98, %v238
    %v240 = vpop.f32.mrb[0].mxu0
    %v241 = vadd.f32 %v102, %v240
    %242 = vdwg.mxu0
    %v243 = vld [vmem:[#allocation9] sm:$0xff]
    %v244 = vld [vmem:[#allocation9 + $0x8] sm:$0xff]
    %v245 = vld [vmem:[#allocation9 + $0x10] sm:$0xff]
    %v246 = vld [vmem:[#allocation9 + $0x18] sm:$0xff]
    %v247 = vld [vmem:[#allocation9 + $0x20] sm:$0xff]
    %v248 = vld [vmem:[#allocation9 + $0x28] sm:$0xff]
    %v249 = vld [vmem:[#allocation9 + $0x30] sm:$0xff]
    %v250 = vld [vmem:[#allocation9 + $0x38] sm:$0xff]
    %v251 = vld [vmem:[#allocation9 + $0x40] sm:$0xff]
    %v252 = vld [vmem:[#allocation9 + $0x48] sm:$0xff]
    %v253 = vld [vmem:[#allocation9 + $0x50] sm:$0xff]
    %v254 = vld [vmem:[#allocation9 + $0x58] sm:$0xff]
    %v255 = vld [vmem:[#allocation9 + $0x60] sm:$0xff]
    %v256 = vld [vmem:[#allocation9 + $0x68] sm:$0xff]
    %v257 = vld [vmem:[#allocation9 + $0x70] sm:$0xff]
    %v258 = vld [vmem:[#allocation9 + $0x78] sm:$0xff]
    %v259 = vld [vmem:[%s4] sm:$0x1]
    %vm260 = vcmask 523264
    %v262 = vsel %vm260, 0.0, 0
    %264 = vmatprep.subr.mxu0 %v244
    %265 = vmatpush1.msra.mxu0 %v243
    %266 = vmatprep.subr.mxu0 %v246
    %267 = vmatpush1.msra.mxu0 %v245
    %268 = vmatprep.subr.mxu0 %v248
    %269 = vmatpush1.msra.mxu0 %v247
    %270 = vmatprep.subr.mxu0 %v250
    %271 = vmatpush1.msra.mxu0 %v249
    %272 = vmatprep.subr.mxu0 %v252
    %273 = vmatpush1.msra.mxu0 %v251
    %274 = vmatprep.subr.mxu0 %v254
    %275 = vmatpush1.msra.mxu0 %v253
    %276 = vmatprep.subr.mxu0 %v256
    %277 = vmatpush1.msra.mxu0 %v255
    %278 = vmatprep.subr.mxu0 %v258
    %279 = vmatpush1.msra.mxu0 %v257
    %280 = vmatprep.subr.mxu0 0.0
    %281 = vmatpush1.msra.mxu0 0.0
    %282 = vmatprep.subr.mxu0 0.0
    %283 = vmatpush1.msra.mxu0 0.0
    %284 = vmatprep.subr.mxu0 0.0
    %285 = vmatpush1.msra.mxu0 0.0
    %286 = vmatprep.subr.mxu0 0.0
    %287 = vmatpush1.msra.mxu0 0.0
    %288 = vmatprep.subr.mxu0 0.0
    %289 = vmatpush1.msra.mxu0 0.0
    %290 = vmatprep.subr.mxu0 0.0
    %291 = vmatpush1.msra.mxu0 0.0
    %292 = vmatprep.subr.mxu0 0.0
    %293 = vmatpush1.msra.mxu0 0.0
    %294 = vmatprep.subr.mxu0 0.0
    %295 = vmatpush1.msra.mxu0 0.0
    %296 = vmatprep.subr.mxu0 0.0
    %297 = vmatpush1.msra.mxu0 0.0
    %298 = vmatprep.subr.mxu0 0.0
    %299 = vmatpush1.msra.mxu0 0.0
    %300 = vmatprep.subr.mxu0 0.0
    %301 = vmatpush1.msra.mxu0 0.0
    %302 = vmatprep.subr.mxu0 0.0
    %303 = vmatpush1.msra.mxu0 0.0
    %304 = vmatprep.subr.mxu0 0.0
    %305 = vmatpush1.msra.mxu0 0.0
    %306 = vmatprep.subr.mxu0 0.0
    %307 = vmatpush1.msra.mxu0 0.0
    %308 = vmatprep.subr.mxu0 0.0
    %309 = vmatpush1.msra.mxu0 0.0
    %310 = vmatprep.subr.mxu0 0.0
    %311 = vmatpush1.msra.mxu0 0.0
    %312 = vmatprep.subr.mxu0 0.0
    %313 = vmatpush1.msra.mxu0 0.0
    %314 = vmatprep.subr.mxu0 0.0
    %315 = vmatpush1.msra.mxu0 0.0
    %316 = vmatprep.subr.mxu0 0.0
    %317 = vmatpush1.msra.mxu0 0.0
    %318 = vmatprep.subr.mxu0 0.0
    %319 = vmatpush1.msra.mxu0 0.0
    %320 = vmatprep.subr.mxu0 0.0
    %321 = vmatpush1.msra.mxu0 0.0
    %322 = vmatprep.subr.mxu0 0.0
    %323 = vmatpush1.msra.mxu0 0.0
    %324 = vmatprep.subr.mxu0 0.0
    %325 = vmatpush1.msra.mxu0 0.0
    %326 = vmatprep.subr.mxu0 0.0
    %327 = vmatpush1.msra.mxu0 0.0
    %328 = vmatprep.mubr.f32.mxu0 0.0
    %329 = vmatmul.mubr.f32.gmra.mrb[0].mxu0 %v262
    %v330 = vpop.f32.mrb[0].mxu0
    %v331 = vadd.f32 0.0, %v330
    %v332 = vpop.f32.mrb[0].mxu0
    %v333 = vadd.f32 0.0, %v332
    %334 = vdwg.mxu0
    %v335 = vadd.f32 %v331, %v197
    %v336 = vadd.f32 %v333, %v241
    %v337 = vxor.u32 %v335, 2147483648
    %v338 = vmul.f32 %v337, 1.442695
    %v339 = vpow.pop %v338
    %v340 = vadd.f32 %v339, 1.0
    %v341 = vrcp.pop %v340
    %v342 = vmul.f32 1.0, %v341
    %v343 = vtanh.pop %v335
    %v344 = vmul.f32 %v342, 0.0
    %346 = vrot.lane.b32.xlu0 %v343, 64
    %v347 = vpop.permute.xlu0 %346
    %v349 = vmul.f32 %v342, %v347
    %351 = vrot.lane.b32.xlu0 %v349, 32
    %v352 = vpop.permute.xlu0 %351
    %v354 = vadd.f32 %v344, %v352
    %v355 = vtanh.pop %v354
    %357 = vrot.lane.b32.xlu0 %v355, 64
    %v358 = vpop.permute.xlu0 %357
    %v360 = vmul.f32 %v342, %v358
    %v361 = vxor.u32 %v336, 2147483648
    %v362 = vmul.f32 %v361, 1.442695
    %v363 = vpow.pop %v362
    %v364 = vadd.f32 %v363, 1.0
    %v365 = vrcp.pop %v364
    %v366 = vmul.f32 1.0, %v365
    %v367 = vtanh.pop %v336
    %v368 = vmul.f32 %v366, 0.0
    %370 = vrot.lane.b32.xlu0 %v367, 64
    %v371 = vpop.permute.xlu0 %370
    %v373 = vmul.f32 %v366, %v371
    %375 = vrot.lane.b32.xlu0 %v373, 32
    %v376 = vpop.permute.xlu0 %375
    %v378 = vadd.f32 %v368, %v376
    %v379 = vtanh.pop %v378
    %381 = vrot.lane.b32.xlu0 %v379, 64
    %v382 = vpop.permute.xlu0 %381
    %v384 = vmul.f32 %v366, %v382
    %v386 = vlaneseq
    %v387 = vshrl.u32 %v386, 7
    %v388 = vsub.s32 0, %v387
    %v389 = vrot.slane %v259, %v388
    %390 = vrot.lane.b32.xlu0 %v389, 96
    %v391 = vpop.permute.xlu0 %390
    %v393 = vmul.f32 %v360, %v391
    %395 = vrot.lane.b32.xlu0 %v393, 32
    %v396 = vpop.permute.xlu0 %395
    %v398 = vsel %vm105, %v396, 0.0
    %399 = vadd.xlane.f32.xlu0 %v398
    %v400 = vpop.xlane.xlu0 %399
    %401 = vrot.lane.b32.xlu0 %v389, 64
    %v402 = vpop.permute.xlu0 %401
    %v404 = vmul.f32 %v384, %v402
    %406 = vrot.lane.b32.xlu0 %v404, 32
    %v407 = vpop.permute.xlu0 %406
    %v409 = vsel %vm105, %v407, 0.0
    %410 = vadd.xlane.f32.xlu0 %v409
    %v411 = vpop.xlane.xlu0 %410
    %413 = vrot.lane.b32.xlu0 %v360, 32
    %v414 = vpop.permute.xlu0 %413
    %417 = vrot.lane.b32.xlu0 %v384, 64
    %v418 = vpop.permute.xlu0 %417
    %v420 = vsel %vm105, %v414, %v418
    %v422 = vsel %vm260, %v420, 0
    %424 = vmatprep.subr.mxu0 %v244
    %425 = vmatpush1.msra.mxu0 %v243
    %426 = vmatprep.subr.mxu0 %v246
    %427 = vmatpush1.msra.mxu0 %v245
    %428 = vmatprep.subr.mxu0 %v248
    %429 = vmatpush1.msra.mxu0 %v247
    %430 = vmatprep.subr.mxu0 %v250
    %431 = vmatpush1.msra.mxu0 %v249
    %432 = vmatprep.subr.mxu0 %v252
    %433 = vmatpush1.msra.mxu0 %v251
    %434 = vmatprep.subr.mxu0 %v254
    %435 = vmatpush1.msra.mxu0 %v253
    %436 = vmatprep.subr.mxu0 %v256
    %437 = vmatpush1.msra.mxu0 %v255
    %438 = vmatprep.subr.mxu0 %v258
    %439 = vmatpush1.msra.mxu0 %v257
    %440 = vmatprep.subr.mxu0 0.0
    %441 = vmatpush1.msra.mxu0 0.0
    %442 = vmatprep.subr.mxu0 0.0
    %443 = vmatpush1.msra.mxu0 0.0
    %444 = vmatprep.subr.mxu0 0.0
    %445 = vmatpush1.msra.mxu0 0.0
    %446 = vmatprep.subr.mxu0 0.0
    %447 = vmatpush1.msra.mxu0 0.0
    %448 = vmatprep.subr.mxu0 0.0
    %449 = vmatpush1.msra.mxu0 0.0
    %450 = vmatprep.subr.mxu0 0.0
    %451 = vmatpush1.msra.mxu0 0.0
    %452 = vmatprep.subr.mxu0 0.0
    %453 = vmatpush1.msra.mxu0 0.0
    %454 = vmatprep.subr.mxu0 0.0
    %455 = vmatpush1.msra.mxu0 0.0
    %456 = vmatprep.subr.mxu0 0.0
    %457 = vmatpush1.msra.mxu0 0.0
    %458 = vmatprep.subr.mxu0 0.0
    %459 = vmatpush1.msra.mxu0 0.0
    %460 = vmatprep.subr.mxu0 0.0
    %461 = vmatpush1.msra.mxu0 0.0
    %462 = vmatprep.subr.mxu0 0.0
    %463 = vmatpush1.msra.mxu0 0.0
    %464 = vmatprep.subr.mxu0 0.0
    %465 = vmatpush1.msra.mxu0 0.0
    %466 = vmatprep.subr.mxu0 0.0
    %467 = vmatpush1.msra.mxu0 0.0
    %468 = vmatprep.subr.mxu0 0.0
    %469 = vmatpush1.msra.mxu0 0.0
    %470 = vmatprep.subr.mxu0 0.0
    %471 = vmatpush1.msra.mxu0 0.0
    %472 = vmatprep.subr.mxu0 0.0
    %473 = vmatpush1.msra.mxu0 0.0
    %474 = vmatprep.subr.mxu0 0.0
    %475 = vmatpush1.msra.mxu0 0.0
    %476 = vmatprep.subr.mxu0 0.0
    %477 = vmatpush1.msra.mxu0 0.0
    %478 = vmatprep.subr.mxu0 0.0
    %479 = vmatpush1.msra.mxu0 0.0
    %480 = vmatprep.subr.mxu0 0.0
    %481 = vmatpush1.msra.mxu0 0.0
    %482 = vmatprep.subr.mxu0 0.0
    %483 = vmatpush1.msra.mxu0 0.0
    %484 = vmatprep.subr.mxu0 0.0
    %485 = vmatpush1.msra.mxu0 0.0
    %486 = vmatprep.subr.mxu0 0.0
    %487 = vmatpush1.msra.mxu0 0.0
    %488 = vmatprep.mubr.f32.mxu0 0.0
    %489 = vmatmul.mubr.f32.gmra.mrb[0].mxu0 %v422
    %v490 = vpop.f32.mrb[0].mxu0
    %v491 = vadd.f32 0.0, %v490
    %v492 = vpop.f32.mrb[0].mxu0
    %v493 = vadd.f32 0.0, %v492
    %494 = vdwg.mxu0
    %v495 = vadd.f32 %v491, %v203
    %v496 = vadd.f32 %v493, %v235
    %v497 = vxor.u32 %v495, 2147483648
    %v498 = vmul.f32 %v497, 1.442695
    %v499 = vpow.pop %v498
    %v500 = vadd.f32 %v499, 1.0
    %v501 = vrcp.pop %v500
    %v502 = vmul.f32 1.0, %v501
    %v503 = vtanh.pop %v495
    %v504 = vmul.f32 %v502, %v354
    %506 = vrot.lane.b32.xlu0 %v503, 64
    %v507 = vpop.permute.xlu0 %506
    %v509 = vmul.f32 %v502, %v507
    %511 = vrot.lane.b32.xlu0 %v509, 32
    %v512 = vpop.permute.xlu0 %511
    %v514 = vadd.f32 %v504, %v512
    %v515 = vtanh.pop %v514
    %517 = vrot.lane.b32.xlu0 %v515, 64
    %v518 = vpop.permute.xlu0 %517
    %v520 = vmul.f32 %v502, %v518
    %v521 = vxor.u32 %v496, 2147483648
    %v522 = vmul.f32 %v521, 1.442695
    %v523 = vpow.pop %v522
    %v524 = vadd.f32 %v523, 1.0
    %v525 = vrcp.pop %v524
    %v526 = vmul.f32 1.0, %v525
    %v527 = vtanh.pop %v496
    %v528 = vmul.f32 %v526, %v378
    %530 = vrot.lane.b32.xlu0 %v527, 64
    %v531 = vpop.permute.xlu0 %530
    %v533 = vmul.f32 %v526, %v531
    %535 = vrot.lane.b32.xlu0 %v533, 32
    %v536 = vpop.permute.xlu0 %535
    %v538 = vadd.f32 %v528, %v536
    %v539 = vtanh.pop %v538
    %541 = vrot.lane.b32.xlu0 %v539, 64
    %v542 = vpop.permute.xlu0 %541
    %v544 = vmul.f32 %v526, %v542
    %v545 = vmul.f32 %v520, %v391
    %547 = vrot.lane.b32.xlu0 %v545, 32
    %v548 = vpop.permute.xlu0 %547
    %v550 = vsel %vm105, %v548, 0.0
    %551 = vadd.xlane.f32.xlu0 %v550
    %v552 = vpop.xlane.xlu0 %551
    %v553 = vmul.f32 %v544, %v402
    %555 = vrot.lane.b32.xlu0 %v553, 32
    %v556 = vpop.permute.xlu0 %555
    %v558 = vsel %vm105, %v556, 0.0
    %559 = vadd.xlane.f32.xlu0 %v558
    %v560 = vpop.xlane.xlu0 %559
    %562 = vrot.lane.b32.xlu0 %v520, 32
    %v563 = vpop.permute.xlu0 %562
    %566 = vrot.lane.b32.xlu0 %v544, 64
    %v567 = vpop.permute.xlu0 %566
    %v569 = vsel %vm105, %v563, %v567
    %v571 = vsel %vm260, %v569, 0
    %573 = vmatprep.subr.mxu0 %v244
    %574 = vmatpush1.msra.mxu0 %v243
    %575 = vmatprep.subr.mxu0 %v246
    %576 = vmatpush1.msra.mxu0 %v245
    %577 = vmatprep.subr.mxu0 %v248
    %578 = vmatpush1.msra.mxu0 %v247
    %579 = vmatprep.subr.mxu0 %v250
    %580 = vmatpush1.msra.mxu0 %v249
    %581 = vmatprep.subr.mxu0 %v252
    %582 = vmatpush1.msra.mxu0 %v251
    %583 = vmatprep.subr.mxu0 %v254
    %584 = vmatpush1.msra.mxu0 %v253
    %585 = vmatprep.subr.mxu0 %v256
    %586 = vmatpush1.msra.mxu0 %v255
    %587 = vmatprep.subr.mxu0 %v258
    %588 = vmatpush1.msra.mxu0 %v257
    %589 = vmatprep.subr.mxu0 0.0
    %590 = vmatpush1.msra.mxu0 0.0
    %591 = vmatprep.subr.mxu0 0.0
    %592 = vmatpush1.msra.mxu0 0.0
    %593 = vmatprep.subr.mxu0 0.0
    %594 = vmatpush1.msra.mxu0 0.0
    %595 = vmatprep.subr.mxu0 0.0
    %596 = vmatpush1.msra.mxu0 0.0
    %597 = vmatprep.subr.mxu0 0.0
    %598 = vmatpush1.msra.mxu0 0.0
    %599 = vmatprep.subr.mxu0 0.0
    %600 = vmatpush1.msra.mxu0 0.0
    %601 = vmatprep.subr.mxu0 0.0
    %602 = vmatpush1.msra.mxu0 0.0
    %603 = vmatprep.subr.mxu0 0.0
    %604 = vmatpush1.msra.mxu0 0.0
    %605 = vmatprep.subr.mxu0 0.0
    %606 = vmatpush1.msra.mxu0 0.0
    %607 = vmatprep.subr.mxu0 0.0
    %608 = vmatpush1.msra.mxu0 0.0
    %609 = vmatprep.subr.mxu0 0.0
    %610 = vmatpush1.msra.mxu0 0.0
    %611 = vmatprep.subr.mxu0 0.0
    %612 = vmatpush1.msra.mxu0 0.0
    %613 = vmatprep.subr.mxu0 0.0
    %614 = vmatpush1.msra.mxu0 0.0
    %615 = vmatprep.subr.mxu0 0.0
    %616 = vmatpush1.msra.mxu0 0.0
    %617 = vmatprep.subr.mxu0 0.0
    %618 = vmatpush1.msra.mxu0 0.0
    %619 = vmatprep.subr.mxu0 0.0
    %620 = vmatpush1.msra.mxu0 0.0
    %621 = vmatprep.subr.mxu0 0.0
    %622 = vmatpush1.msra.mxu0 0.0
    %623 = vmatprep.subr.mxu0 0.0
    %624 = vmatpush1.msra.mxu0 0.0
    %625 = vmatprep.subr.mxu0 0.0
    %626 = vmatpush1.msra.mxu0 0.0
    %627 = vmatprep.subr.mxu0 0.0
    %628 = vmatpush1.msra.mxu0 0.0
    %629 = vmatprep.subr.mxu0 0.0
    %630 = vmatpush1.msra.mxu0 0.0
    %631 = vmatprep.subr.mxu0 0.0
    %632 = vmatpush1.msra.mxu0 0.0
    %633 = vmatprep.subr.mxu0 0.0
    %634 = vmatpush1.msra.mxu0 0.0
    %635 = vmatprep.subr.mxu0 0.0
    %636 = vmatpush1.msra.mxu0 0.0
    %637 = vmatprep.mubr.f32.mxu0 0.0
    %638 = vmatmul.mubr.f32.gmra.mrb[0].mxu0 %v571
    %v639 = vpop.f32.mrb[0].mxu0
    %v640 = vadd.f32 0.0, %v639
    %v641 = vpop.f32.mrb[0].mxu0
    %v642 = vadd.f32 0.0, %v641
    %643 = vdwg.mxu0
    %v644 = vadd.f32 %v640, %v209
    %v645 = vadd.f32 %v642, %v229
    %v646 = vxor.u32 %v644, 2147483648
    %v647 = vmul.f32 %v646, 1.442695
    %v648 = vpow.pop %v647
    %v649 = vadd.f32 %v648, 1.0
    %v650 = vrcp.pop %v649
    %v651 = vmul.f32 1.0, %v650
    %v652 = vtanh.pop %v644
    %v653 = vmul.f32 %v651, %v514
    %655 = vrot.lane.b32.xlu0 %v652, 64
    %v656 = vpop.permute.xlu0 %655
    %v658 = vmul.f32 %v651, %v656
    %660 = vrot.lane.b32.xlu0 %v658, 32
    %v661 = vpop.permute.xlu0 %660
    %v663 = vadd.f32 %v653, %v661
    %v664 = vtanh.pop %v663
    %666 = vrot.lane.b32.xlu0 %v664, 64
    %v667 = vpop.permute.xlu0 %666
    %v669 = vmul.f32 %v651, %v667
    %v670 = vxor.u32 %v645, 2147483648
    %v671 = vmul.f32 %v670, 1.442695
    %v672 = vpow.pop %v671
    %v673 = vadd.f32 %v672, 1.0
    %v674 = vrcp.pop %v673
    %v675 = vmul.f32 1.0, %v674
    %v676 = vtanh.pop %v645
    %v677 = vmul.f32 %v675, %v538
    %679 = vrot.lane.b32.xlu0 %v676, 64
    %v680 = vpop.permute.xlu0 %679
    %v682 = vmul.f32 %v675, %v680
    %684 = vrot.lane.b32.xlu0 %v682, 32
    %v685 = vpop.permute.xlu0 %684
    %v687 = vadd.f32 %v677, %v685
    %v688 = vtanh.pop %v687
    %690 = vrot.lane.b32.xlu0 %v688, 64
    %v691 = vpop.permute.xlu0 %690
    %v693 = vmul.f32 %v675, %v691
    %v694 = vmul.f32 %v669, %v391
    %696 = vrot.lane.b32.xlu0 %v694, 32
    %v697 = vpop.permute.xlu0 %696
    %v699 = vsel %vm105, %v697, 0.0
    %700 = vadd.xlane.f32.xlu0 %v699
    %v701 = vpop.xlane.xlu0 %700
    %v702 = vmul.f32 %v693, %v402
    %704 = vrot.lane.b32.xlu0 %v702, 32
    %v705 = vpop.permute.xlu0 %704
    %v707 = vsel %vm105, %v705, 0.0
    %708 = vadd.xlane.f32.xlu0 %v707
    %v709 = vpop.xlane.xlu0 %708
    %711 = vrot.lane.b32.xlu0 %v669, 32
    %v712 = vpop.permute.xlu0 %711
    %715 = vrot.lane.b32.xlu0 %v693, 64
    %v716 = vpop.permute.xlu0 %715
    %v718 = vsel %vm105, %v712, %v716
    %v720 = vsel %vm260, %v718, 0
    %722 = vmatprep.subr.mxu0 %v244
    %723 = vmatpush1.msra.mxu0 %v243
    %724 = vmatprep.subr.mxu0 %v246
    %725 = vmatpush1.msra.mxu0 %v245
    %726 = vmatprep.subr.mxu0 %v248
    %727 = vmatpush1.msra.mxu0 %v247
    %728 = vmatprep.subr.mxu0 %v250
    %729 = vmatpush1.msra.mxu0 %v249
    %730 = vmatprep.subr.mxu0 %v252
    %731 = vmatpush1.msra.mxu0 %v251
    %732 = vmatprep.subr.mxu0 %v254
    %733 = vmatpush1.msra.mxu0 %v253
    %734 = vmatprep.subr.mxu0 %v256
    %735 = vmatpush1.msra.mxu0 %v255
    %736 = vmatprep.subr.mxu0 %v258
    %737 = vmatpush1.msra.mxu0 %v257
    %738 = vmatprep.subr.mxu0 0.0
    %739 = vmatpush1.msra.mxu0 0.0
    %740 = vmatprep.subr.mxu0 0.0
    %741 = vmatpush1.msra.mxu0 0.0
    %742 = vmatprep.subr.mxu0 0.0
    %743 = vmatpush1.msra.mxu0 0.0
    %744 = vmatprep.subr.mxu0 0.0
    %745 = vmatpush1.msra.mxu0 0.0
    %746 = vmatprep.subr.mxu0 0.0
    %747 = vmatpush1.msra.mxu0 0.0
    %748 = vmatprep.subr.mxu0 0.0
    %749 = vmatpush1.msra.mxu0 0.0
    %750 = vmatprep.subr.mxu0 0.0
    %751 = vmatpush1.msra.mxu0 0.0
    %752 = vmatprep.subr.mxu0 0.0
    %753 = vmatpush1.msra.mxu0 0.0
    %754 = vmatprep.subr.mxu0 0.0
    %755 = vmatpush1.msra.mxu0 0.0
    %756 = vmatprep.subr.mxu0 0.0
    %757 = vmatpush1.msra.mxu0 0.0
    %758 = vmatprep.subr.mxu0 0.0
    %759 = vmatpush1.msra.mxu0 0.0
    %760 = vmatprep.subr.mxu0 0.0
    %761 = vmatpush1.msra.mxu0 0.0
    %762 = vmatprep.subr.mxu0 0.0
    %763 = vmatpush1.msra.mxu0 0.0
    %764 = vmatprep.subr.mxu0 0.0
    %765 = vmatpush1.msra.mxu0 0.0
    %766 = vmatprep.subr.mxu0 0.0
    %767 = vmatpush1.msra.mxu0 0.0
    %768 = vmatprep.subr.mxu0 0.0
    %769 = vmatpush1.msra.mxu0 0.0
    %770 = vmatprep.subr.mxu0 0.0
    %771 = vmatpush1.msra.mxu0 0.0
    %772 = vmatprep.subr.mxu0 0.0
    %773 = vmatpush1.msra.mxu0 0.0
    %774 = vmatprep.subr.mxu0 0.0
    %775 = vmatpush1.msra.mxu0 0.0
    %776 = vmatprep.subr.mxu0 0.0
    %777 = vmatpush1.msra.mxu0 0.0
    %778 = vmatprep.subr.mxu0 0.0
    %779 = vmatpush1.msra.mxu0 0.0
    %780 = vmatprep.subr.mxu0 0.0
    %781 = vmatpush1.msra.mxu0 0.0
    %782 = vmatprep.subr.mxu0 0.0
    %783 = vmatpush1.msra.mxu0 0.0
    %784 = vmatprep.subr.mxu0 0.0
    %785 = vmatpush1.msra.mxu0 0.0
    %786 = vmatprep.mubr.f32.mxu0 0.0
    %787 = vmatmul.mubr.f32.gmra.mrb[0].mxu0 %v720
    %v788 = vpop.f32.mrb[0].mxu0
    %v789 = vadd.f32 0.0, %v788
    %v790 = vpop.f32.mrb[0].mxu0
    %v791 = vadd.f32 0.0, %v790
    %792 = vdwg.mxu0
    %v793 = vadd.f32 %v789, %v215
    %v794 = vadd.f32 %v791, %v223
    %v795 = vxor.u32 %v793, 2147483648
    %v796 = vmul.f32 %v795, 1.442695
    %v797 = vpow.pop %v796
    %v798 = vadd.f32 %v797, 1.0
    %v799 = vrcp.pop %v798
    %v800 = vmul.f32 1.0, %v799
    %v801 = vtanh.pop %v793
    %v802 = vmul.f32 %v800, %v663
    %804 = vrot.lane.b32.xlu0 %v801, 64
    %v805 = vpop.permute.xlu0 %804
    %v807 = vmul.f32 %v800, %v805
    %809 = vrot.lane.b32.xlu0 %v807, 32
    %v810 = vpop.permute.xlu0 %809
    %v812 = vadd.f32 %v802, %v810
    %v813 = vtanh.pop %v812
    %815 = vrot.lane.b32.xlu0 %v813, 64
    %v816 = vpop.permute.xlu0 %815
    %v818 = vmul.f32 %v800, %v816
    %v819 = vxor.u32 %v794, 2147483648
    %v820 = vmul.f32 %v819, 1.442695
    %v821 = vpow.pop %v820
    %v822 = vadd.f32 %v821, 1.0
    %v823 = vrcp.pop %v822
    %v824 = vmul.f32 1.0, %v823
    %v825 = vtanh.pop %v794
    %v826 = vmul.f32 %v824, %v687
    %828 = vrot.lane.b32.xlu0 %v825, 64
    %v829 = vpop.permute.xlu0 %828
    %v831 = vmul.f32 %v824, %v829
    %833 = vrot.lane.b32.xlu0 %v831, 32
    %v834 = vpop.permute.xlu0 %833
    %v836 = vadd.f32 %v826, %v834
    %v837 = vtanh.pop %v836
    %839 = vrot.lane.b32.xlu0 %v837, 64
    %v840 = vpop.permute.xlu0 %839
    %v842 = vmul.f32 %v824, %v840
    %v843 = vmul.f32 %v818, %v391
    %845 = vrot.lane.b32.xlu0 %v843, 32
    %v846 = vpop.permute.xlu0 %845
    %v848 = vsel %vm105, %v846, 0.0
    %849 = vadd.xlane.f32.xlu0 %v848
    %v850 = vpop.xlane.xlu0 %849
    %v851 = vmul.f32 %v842, %v402
    %853 = vrot.lane.b32.xlu0 %v851, 32
    %v854 = vpop.permute.xlu0 %853
    %v856 = vsel %vm105, %v854, 0.0
    %857 = vadd.xlane.f32.xlu0 %v856
    %v858 = vpop.xlane.xlu0 %857
    %860 = vrot.lane.b32.xlu0 %v818, 32
    %v861 = vpop.permute.xlu0 %860
    %864 = vrot.lane.b32.xlu0 %v842, 64
    %v865 = vpop.permute.xlu0 %864
    %v867 = vsel %vm105, %v861, %v865
    %v869 = vsel %vm260, %v867, 0
    %871 = vmatprep.subr.mxu0 %v244
    %872 = vmatpush1.msra.mxu0 %v243
    %873 = vmatprep.subr.mxu0 %v246
    %874 = vmatpush1.msra.mxu0 %v245
    %875 = vmatprep.subr.mxu0 %v248
    %876 = vmatpush1.msra.mxu0 %v247
    %877 = vmatprep.subr.mxu0 %v250
    %878 = vmatpush1.msra.mxu0 %v249
    %879 = vmatprep.subr.mxu0 %v252
    %880 = vmatpush1.msra.mxu0 %v251
    %881 = vmatprep.subr.mxu0 %v254
    %882 = vmatpush1.msra.mxu0 %v253
    %883 = vmatprep.subr.mxu0 %v256
    %884 = vmatpush1.msra.mxu0 %v255
    %885 = vmatprep.subr.mxu0 %v258
    %886 = vmatpush1.msra.mxu0 %v257
    %887 = vmatprep.subr.mxu0 0.0
    %888 = vmatpush1.msra.mxu0 0.0
    %889 = vmatprep.subr.mxu0 0.0
    %890 = vmatpush1.msra.mxu0 0.0
    %891 = vmatprep.subr.mxu0 0.0
    %892 = vmatpush1.msra.mxu0 0.0
    %893 = vmatprep.subr.mxu0 0.0
    %894 = vmatpush1.msra.mxu0 0.0
    %895 = vmatprep.subr.mxu0 0.0
    %896 = vmatpush1.msra.mxu0 0.0
    %897 = vmatprep.subr.mxu0 0.0
    %898 = vmatpush1.msra.mxu0 0.0
    %899 = vmatprep.subr.mxu0 0.0
    %900 = vmatpush1.msra.mxu0 0.0
    %901 = vmatprep.subr.mxu0 0.0
    %902 = vmatpush1.msra.mxu0 0.0
    %903 = vmatprep.subr.mxu0 0.0
    %904 = vmatpush1.msra.mxu0 0.0
    %905 = vmatprep.subr.mxu0 0.0
    %906 = vmatpush1.msra.mxu0 0.0
    %907 = vmatprep.subr.mxu0 0.0
    %908 = vmatpush1.msra.mxu0 0.0
    %909 = vmatprep.subr.mxu0 0.0
    %910 = vmatpush1.msra.mxu0 0.0
    %911 = vmatprep.subr.mxu0 0.0
    %912 = vmatpush1.msra.mxu0 0.0
    %913 = vmatprep.subr.mxu0 0.0
    %914 = vmatpush1.msra.mxu0 0.0
    %915 = vmatprep.subr.mxu0 0.0
    %916 = vmatpush1.msra.mxu0 0.0
    %917 = vmatprep.subr.mxu0 0.0
    %918 = vmatpush1.msra.mxu0 0.0
    %919 = vmatprep.subr.mxu0 0.0
    %920 = vmatpush1.msra.mxu0 0.0
    %921 = vmatprep.subr.mxu0 0.0
    %922 = vmatpush1.msra.mxu0 0.0
    %923 = vmatprep.subr.mxu0 0.0
    %924 = vmatpush1.msra.mxu0 0.0
    %925 = vmatprep.subr.mxu0 0.0
    %926 = vmatpush1.msra.mxu0 0.0
    %927 = vmatprep.subr.mxu0 0.0
    %928 = vmatpush1.msra.mxu0 0.0
    %929 = vmatprep.subr.mxu0 0.0
    %930 = vmatpush1.msra.mxu0 0.0
    %931 = vmatprep.subr.mxu0 0.0
    %932 = vmatpush1.msra.mxu0 0.0
    %933 = vmatprep.subr.mxu0 0.0
    %934 = vmatpush1.msra.mxu0 0.0
    %935 = vmatprep.mubr.f32.mxu0 0.0
    %936 = vmatmul.mubr.f32.gmra.mrb[0].mxu0 %v869
    %v937 = vpop.f32.mrb[0].mxu0
    %v938 = vadd.f32 0.0, %v937
    %v939 = vpop.f32.mrb[0].mxu0
    %v940 = vadd.f32 0.0, %v939
    %941 = vdwg.mxu0
    %v942 = vadd.f32 %v938, %v221
    %v943 = vadd.f32 %v940, %v217
    %v944 = vxor.u32 %v942, 2147483648
    %v945 = vmul.f32 %v944, 1.442695
    %v946 = vpow.pop %v945
    %v947 = vadd.f32 %v946, 1.0
    %v948 = vrcp.pop %v947
    %v949 = vmul.f32 1.0, %v948
    %v950 = vtanh.pop %v942
    %v951 = vmul.f32 %v949, %v812
    %953 = vrot.lane.b32.xlu0 %v950, 64
    %v954 = vpop.permute.xlu0 %953
    %v956 = vmul.f32 %v949, %v954
    %958 = vrot.lane.b32.xlu0 %v956, 32
    %v959 = vpop.permute.xlu0 %958
    %v961 = vadd.f32 %v951, %v959
    %v962 = vtanh.pop %v961
    %964 = vrot.lane.b32.xlu0 %v962, 64
    %v965 = vpop.permute.xlu0 %964
    %v967 = vmul.f32 %v949, %v965
    %v968 = vxor.u32 %v943, 2147483648
    %v969 = vmul.f32 %v968, 1.442695
    %v970 = vpow.pop %v969
    %v971 = vadd.f32 %v970, 1.0
    %v972 = vrcp.pop %v971
    %v973 = vmul.f32 1.0, %v972
    %v974 = vtanh.pop %v943
    %v975 = vmul.f32 %v973, %v836
    %977 = vrot.lane.b32.xlu0 %v974, 64
    %v978 = vpop.permute.xlu0 %977
    %v980 = vmul.f32 %v973, %v978
    %982 = vrot.lane.b32.xlu0 %v980, 32
    %v983 = vpop.permute.xlu0 %982
    %v985 = vadd.f32 %v975, %v983
    %v986 = vtanh.pop %v985
    %988 = vrot.lane.b32.xlu0 %v986, 64
    %v989 = vpop.permute.xlu0 %988
    %v991 = vmul.f32 %v973, %v989
    %v992 = vmul.f32 %v967, %v391
    %994 = vrot.lane.b32.xlu0 %v992, 32
    %v995 = vpop.permute.xlu0 %994
    %v997 = vsel %vm105, %v995, 0.0
    %998 = vadd.xlane.f32.xlu0 %v997
    %v999 = vpop.xlane.xlu0 %998
    %v1000 = vmul.f32 %v991, %v402
    %1002 = vrot.lane.b32.xlu0 %v1000, 32
    %v1003 = vpop.permute.xlu0 %1002
    %v1005 = vsel %vm105, %v1003, 0.0
    %1006 = vadd.xlane.f32.xlu0 %v1005
    %v1007 = vpop.xlane.xlu0 %1006
    %1009 = vrot.lane.b32.xlu0 %v967, 32
    %v1010 = vpop.permute.xlu0 %1009
    %1013 = vrot.lane.b32.xlu0 %v991, 64
    %v1014 = vpop.permute.xlu0 %1013
    %v1016 = vsel %vm105, %v1010, %v1014
    %v1018 = vsel %vm260, %v1016, 0
    %1020 = vmatprep.subr.mxu0 %v244
    %1021 = vmatpush1.msra.mxu0 %v243
    %1022 = vmatprep.subr.mxu0 %v246
    %1023 = vmatpush1.msra.mxu0 %v245
    %1024 = vmatprep.subr.mxu0 %v248
    %1025 = vmatpush1.msra.mxu0 %v247
    %1026 = vmatprep.subr.mxu0 %v250
    %1027 = vmatpush1.msra.mxu0 %v249
    %1028 = vmatprep.subr.mxu0 %v252
    %1029 = vmatpush1.msra.mxu0 %v251
    %1030 = vmatprep.subr.mxu0 %v254
    %1031 = vmatpush1.msra.mxu0 %v253
    %1032 = vmatprep.subr.mxu0 %v256
    %1033 = vmatpush1.msra.mxu0 %v255
    %1034 = vmatprep.subr.mxu0 %v258
    %1035 = vmatpush1.msra.mxu0 %v257
    %1036 = vmatprep.subr.mxu0 0.0
    %1037 = vmatpush1.msra.mxu0 0.0
    %1038 = vmatprep.subr.mxu0 0.0
    %1039 = vmatpush1.msra.mxu0 0.0
    %1040 = vmatprep.subr.mxu0 0.0
    %1041 = vmatpush1.msra.mxu0 0.0
    %1042 = vmatprep.subr.mxu0 0.0
    %1043 = vmatpush1.msra.mxu0 0.0
    %1044 = vmatprep.subr.mxu0 0.0
    %1045 = vmatpush1.msra.mxu0 0.0
    %1046 = vmatprep.subr.mxu0 0.0
    %1047 = vmatpush1.msra.mxu0 0.0
    %1048 = vmatprep.subr.mxu0 0.0
    %1049 = vmatpush1.msra.mxu0 0.0
    %1050 = vmatprep.subr.mxu0 0.0
    %1051 = vmatpush1.msra.mxu0 0.0
    %1052 = vmatprep.subr.mxu0 0.0
    %1053 = vmatpush1.msra.mxu0 0.0
    %1054 = vmatprep.subr.mxu0 0.0
    %1055 = vmatpush1.msra.mxu0 0.0
    %1056 = vmatprep.subr.mxu0 0.0
    %1057 = vmatpush1.msra.mxu0 0.0
    %1058 = vmatprep.subr.mxu0 0.0
    %1059 = vmatpush1.msra.mxu0 0.0
    %1060 = vmatprep.subr.mxu0 0.0
    %1061 = vmatpush1.msra.mxu0 0.0
    %1062 = vmatprep.subr.mxu0 0.0
    %1063 = vmatpush1.msra.mxu0 0.0
    %1064 = vmatprep.subr.mxu0 0.0
    %1065 = vmatpush1.msra.mxu0 0.0
    %1066 = vmatprep.subr.mxu0 0.0
    %1067 = vmatpush1.msra.mxu0 0.0
    %1068 = vmatprep.subr.mxu0 0.0
    %1069 = vmatpush1.msra.mxu0 0.0
    %1070 = vmatprep.subr.mxu0 0.0
    %1071 = vmatpush1.msra.mxu0 0.0
    %1072 = vmatprep.subr.mxu0 0.0
    %1073 = vmatpush1.msra.mxu0 0.0
    %1074 = vmatprep.subr.mxu0 0.0
    %1075 = vmatpush1.msra.mxu0 0.0
    %1076 = vmatprep.subr.mxu0 0.0
    %1077 = vmatpush1.msra.mxu0 0.0
    %1078 = vmatprep.subr.mxu0 0.0
    %1079 = vmatpush1.msra.mxu0 0.0
    %1080 = vmatprep.subr.mxu0 0.0
    %1081 = vmatpush1.msra.mxu0 0.0
    %1082 = vmatprep.subr.mxu0 0.0
    %1083 = vmatpush1.msra.mxu0 0.0
    %1084 = vmatprep.mubr.f32.mxu0 0.0
    %1085 = vmatmul.mubr.f32.gmra.mrb[0].mxu0 %v1018
    %v1086 = vpop.f32.mrb[0].mxu0
    %v1087 = vadd.f32 0.0, %v1086
    %v1088 = vpop.f32.mrb[0].mxu0
    %v1089 = vadd.f32 0.0, %v1088
    %1090 = vdwg.mxu0
    %v1091 = vadd.f32 %v1087, %v227
    %v1092 = vadd.f32 %v1089, %v211
    %v1093 = vxor.u32 %v1091, 2147483648
    %v1094 = vmul.f32 %v1093, 1.442695
    %v1095 = vpow.pop %v1094
    %v1096 = vadd.f32 %v1095, 1.0
    %v1097 = vrcp.pop %v1096
    %v1098 = vmul.f32 1.0, %v1097
    %v1099 = vtanh.pop %v1091
    %v1100 = vmul.f32 %v1098, %v961
    %1102 = vrot.lane.b32.xlu0 %v1099, 64
    %v1103 = vpop.permute.xlu0 %1102
    %v1105 = vmul.f32 %v1098, %v1103
    %1107 = vrot.lane.b32.xlu0 %v1105, 32
    %v1108 = vpop.permute.xlu0 %1107
    %v1110 = vadd.f32 %v1100, %v1108
    %v1111 = vtanh.pop %v1110
    %1113 = vrot.lane.b32.xlu0 %v1111, 64
    %v1114 = vpop.permute.xlu0 %1113
    %v1116 = vmul.f32 %v1098, %v1114
    %v1117 = vxor.u32 %v1092, 2147483648
    %v1118 = vmul.f32 %v1117, 1.442695
    %v1119 = vpow.pop %v1118
    %v1120 = vadd.f32 %v1119, 1.0
    %v1121 = vrcp.pop %v1120
    %v1122 = vmul.f32 1.0, %v1121
    %v1123 = vtanh.pop %v1092
    %v1124 = vmul.f32 %v1122, %v985
    %1126 = vrot.lane.b32.xlu0 %v1123, 64
    %v1127 = vpop.permute.xlu0 %1126
    %v1129 = vmul.f32 %v1122, %v1127
    %1131 = vrot.lane.b32.xlu0 %v1129, 32
    %v1132 = vpop.permute.xlu0 %1131
    %v1134 = vadd.f32 %v1124, %v1132
    %v1135 = vtanh.pop %v1134
    %1137 = vrot.lane.b32.xlu0 %v1135, 64
    %v1138 = vpop.permute.xlu0 %1137
    %v1140 = vmul.f32 %v1122, %v1138
    %v1141 = vmul.f32 %v1116, %v391
    %1143 = vrot.lane.b32.xlu0 %v1141, 32
    %v1144 = vpop.permute.xlu0 %1143
    %v1146 = vsel %vm105, %v1144, 0.0
    %1147 = vadd.xlane.f32.xlu0 %v1146
    %v1148 = vpop.xlane.xlu0 %1147
    %v1149 = vmul.f32 %v1140, %v402
    %1151 = vrot.lane.b32.xlu0 %v1149, 32
    %v1152 = vpop.permute.xlu0 %1151
    %v1154 = vsel %vm105, %v1152, 0.0
    %1155 = vadd.xlane.f32.xlu0 %v1154
    %v1156 = vpop.xlane.xlu0 %1155
    %1158 = vrot.lane.b32.xlu0 %v1116, 32
    %v1159 = vpop.permute.xlu0 %1158
    %1162 = vrot.lane.b32.xlu0 %v1140, 64
    %v1163 = vpop.permute.xlu0 %1162
    %v1165 = vsel %vm105, %v1159, %v1163
    %v1167 = vsel %vm260, %v1165, 0
    %1169 = vmatprep.subr.mxu0 %v244
    %1170 = vmatpush1.msra.mxu0 %v243
    %1171 = vmatprep.subr.mxu0 %v246
    %1172 = vmatpush1.msra.mxu0 %v245
    %1173 = vmatprep.subr.mxu0 %v248
    %1174 = vmatpush1.msra.mxu0 %v247
    %1175 = vmatprep.subr.mxu0 %v250
    %1176 = vmatpush1.msra.mxu0 %v249
    %1177 = vmatprep.subr.mxu0 %v252
    %1178 = vmatpush1.msra.mxu0 %v251
    %1179 = vmatprep.subr.mxu0 %v254
    %1180 = vmatpush1.msra.mxu0 %v253
    %1181 = vmatprep.subr.mxu0 %v256
    %1182 = vmatpush1.msra.mxu0 %v255
    %1183 = vmatprep.subr.mxu0 %v258
    %1184 = vmatpush1.msra.mxu0 %v257
    %1185 = vmatprep.subr.mxu0 0.0
    %1186 = vmatpush1.msra.mxu0 0.0
    %1187 = vmatprep.subr.mxu0 0.0
    %1188 = vmatpush1.msra.mxu0 0.0
    %1189 = vmatprep.subr.mxu0 0.0
    %1190 = vmatpush1.msra.mxu0 0.0
    %1191 = vmatprep.subr.mxu0 0.0
    %1192 = vmatpush1.msra.mxu0 0.0
    %1193 = vmatprep.subr.mxu0 0.0
    %1194 = vmatpush1.msra.mxu0 0.0
    %1195 = vmatprep.subr.mxu0 0.0
    %1196 = vmatpush1.msra.mxu0 0.0
    %1197 = vmatprep.subr.mxu0 0.0
    %1198 = vmatpush1.msra.mxu0 0.0
    %1199 = vmatprep.subr.mxu0 0.0
    %1200 = vmatpush1.msra.mxu0 0.0
    %1201 = vmatprep.subr.mxu0 0.0
    %1202 = vmatpush1.msra.mxu0 0.0
    %1203 = vmatprep.subr.mxu0 0.0
    %1204 = vmatpush1.msra.mxu0 0.0
    %1205 = vmatprep.subr.mxu0 0.0
    %1206 = vmatpush1.msra.mxu0 0.0
    %1207 = vmatprep.subr.mxu0 0.0
    %1208 = vmatpush1.msra.mxu0 0.0
    %1209 = vmatprep.subr.mxu0 0.0
    %1210 = vmatpush1.msra.mxu0 0.0
    %1211 = vmatprep.subr.mxu0 0.0
    %1212 = vmatpush1.msra.mxu0 0.0
    %1213 = vmatprep.subr.mxu0 0.0
    %1214 = vmatpush1.msra.mxu0 0.0
    %1215 = vmatprep.subr.mxu0 0.0
    %1216 = vmatpush1.msra.mxu0 0.0
    %1217 = vmatprep.subr.mxu0 0.0
    %1218 = vmatpush1.msra.mxu0 0.0
    %1219 = vmatprep.subr.mxu0 0.0
    %1220 = vmatpush1.msra.mxu0 0.0
    %1221 = vmatprep.subr.mxu0 0.0
    %1222 = vmatpush1.msra.mxu0 0.0
    %1223 = vmatprep.subr.mxu0 0.0
    %1224 = vmatpush1.msra.mxu0 0.0
    %1225 = vmatprep.subr.mxu0 0.0
    %1226 = vmatpush1.msra.mxu0 0.0
    %1227 = vmatprep.subr.mxu0 0.0
    %1228 = vmatpush1.msra.mxu0 0.0
    %1229 = vmatprep.subr.mxu0 0.0
    %1230 = vmatpush1.msra.mxu0 0.0
    %1231 = vmatprep.subr.mxu0 0.0
    %1232 = vmatpush1.msra.mxu0 0.0
    %1233 = vmatprep.mubr.f32.mxu0 0.0
    %1234 = vmatmul.mubr.f32.gmra.mrb[0].mxu0 %v1167
    %v1235 = vpop.f32.mrb[0].mxu0
    %v1236 = vadd.f32 0.0, %v1235
    %v1237 = vpop.f32.mrb[0].mxu0
    %v1238 = vadd.f32 0.0, %v1237
    %1239 = vdwg.mxu0
    %v1240 = vadd.f32 %v1236, %v233
    %v1241 = vadd.f32 %v1238, %v205
    %v1242 = vxor.u32 %v1240, 2147483648
    %v1243 = vmul.f32 %v1242, 1.442695
    %v1244 = vpow.pop %v1243
    %v1245 = vadd.f32 %v1244, 1.0
    %v1246 = vrcp.pop %v1245
    %v1247 = vmul.f32 1.0, %v1246
    %v1248 = vtanh.pop %v1240
    %v1249 = vmul.f32 %v1247, %v1110
    %1251 = vrot.lane.b32.xlu0 %v1248, 64
    %v1252 = vpop.permute.xlu0 %1251
    %v1254 = vmul.f32 %v1247, %v1252
    %1256 = vrot.lane.b32.xlu0 %v1254, 32
    %v1257 = vpop.permute.xlu0 %1256
    %v1259 = vadd.f32 %v1249, %v1257
    %v1260 = vtanh.pop %v1259
    %1262 = vrot.lane.b32.xlu0 %v1260, 64
    %v1263 = vpop.permute.xlu0 %1262
    %v1265 = vmul.f32 %v1247, %v1263
    %v1266 = vxor.u32 %v1241, 2147483648
    %v1267 = vmul.f32 %v1266, 1.442695
    %v1268 = vpow.pop %v1267
    %v1269 = vadd.f32 %v1268, 1.0
    %v1270 = vrcp.pop %v1269
    %v1271 = vmul.f32 1.0, %v1270
    %v1272 = vtanh.pop %v1241
    %v1273 = vmul.f32 %v1271, %v1134
    %1275 = vrot.lane.b32.xlu0 %v1272, 64
    %v1276 = vpop.permute.xlu0 %1275
    %v1278 = vmul.f32 %v1271, %v1276
    %1280 = vrot.lane.b32.xlu0 %v1278, 32
    %v1281 = vpop.permute.xlu0 %1280
    %v1283 = vadd.f32 %v1273, %v1281
    %v1284 = vtanh.pop %v1283
    %1286 = vrot.lane.b32.xlu0 %v1284, 64
    %v1287 = vpop.permute.xlu0 %1286
    %v1289 = vmul.f32 %v1271, %v1287
    %v1290 = vmul.f32 %v1265, %v391
    %1292 = vrot.lane.b32.xlu0 %v1290, 32
    %v1293 = vpop.permute.xlu0 %1292
    %v1295 = vsel %vm105, %v1293, 0.0
    %1296 = vadd.xlane.f32.xlu0 %v1295
    %v1297 = vpop.xlane.xlu0 %1296
    %v1298 = vmul.f32 %v1289, %v402
    %1300 = vrot.lane.b32.xlu0 %v1298, 32
    %v1301 = vpop.permute.xlu0 %1300
    %v1303 = vsel %vm105, %v1301, 0.0
    %1304 = vadd.xlane.f32.xlu0 %v1303
    %v1305 = vpop.xlane.xlu0 %1304
    %1307 = vrot.lane.b32.xlu0 %v1265, 32
    %v1308 = vpop.permute.xlu0 %1307
    %1311 = vrot.lane.b32.xlu0 %v1289, 64
    %v1312 = vpop.permute.xlu0 %1311
    %v1314 = vsel %vm105, %v1308, %v1312
    %v1316 = vsel %vm260, %v1314, 0
    %1318 = vmatprep.subr.mxu0 %v244
    %1319 = vmatpush1.msra.mxu0 %v243
    %1320 = vmatprep.subr.mxu0 %v246
    %1321 = vmatpush1.msra.mxu0 %v245
    %1322 = vmatprep.subr.mxu0 %v248
    %1323 = vmatpush1.msra.mxu0 %v247
    %1324 = vmatprep.subr.mxu0 %v250
    %1325 = vmatpush1.msra.mxu0 %v249
    %1326 = vmatprep.subr.mxu0 %v252
    %1327 = vmatpush1.msra.mxu0 %v251
    %1328 = vmatprep.subr.mxu0 %v254
    %1329 = vmatpush1.msra.mxu0 %v253
    %1330 = vmatprep.subr.mxu0 %v256
    %1331 = vmatpush1.msra.mxu0 %v255
    %1332 = vmatprep.subr.mxu0 %v258
    %1333 = vmatpush1.msra.mxu0 %v257
    %1334 = vmatprep.subr.mxu0 0.0
    %1335 = vmatpush1.msra.mxu0 0.0
    %1336 = vmatprep.subr.mxu0 0.0
    %1337 = vmatpush1.msra.mxu0 0.0
    %1338 = vmatprep.subr.mxu0 0.0
    %1339 = vmatpush1.msra.mxu0 0.0
    %1340 = vmatprep.subr.mxu0 0.0
    %1341 = vmatpush1.msra.mxu0 0.0
    %1342 = vmatprep.subr.mxu0 0.0
    %1343 = vmatpush1.msra.mxu0 0.0
    %1344 = vmatprep.subr.mxu0 0.0
    %1345 = vmatpush1.msra.mxu0 0.0
    %1346 = vmatprep.subr.mxu0 0.0
    %1347 = vmatpush1.msra.mxu0 0.0
    %1348 = vmatprep.subr.mxu0 0.0
    %1349 = vmatpush1.msra.mxu0 0.0
    %1350 = vmatprep.subr.mxu0 0.0
    %1351 = vmatpush1.msra.mxu0 0.0
    %1352 = vmatprep.subr.mxu0 0.0
    %1353 = vmatpush1.msra.mxu0 0.0
    %1354 = vmatprep.subr.mxu0 0.0
    %1355 = vmatpush1.msra.mxu0 0.0
    %1356 = vmatprep.subr.mxu0 0.0
    %1357 = vmatpush1.msra.mxu0 0.0
    %1358 = vmatprep.subr.mxu0 0.0
    %1359 = vmatpush1.msra.mxu0 0.0
    %1360 = vmatprep.subr.mxu0 0.0
    %1361 = vmatpush1.msra.mxu0 0.0
    %1362 = vmatprep.subr.mxu0 0.0
    %1363 = vmatpush1.msra.mxu0 0.0
    %1364 = vmatprep.subr.mxu0 0.0
    %1365 = vmatpush1.msra.mxu0 0.0
    %1366 = vmatprep.subr.mxu0 0.0
    %1367 = vmatpush1.msra.mxu0 0.0
    %1368 = vmatprep.subr.mxu0 0.0
    %1369 = vmatpush1.msra.mxu0 0.0
    %1370 = vmatprep.subr.mxu0 0.0
    %1371 = vmatpush1.msra.mxu0 0.0
    %1372 = vmatprep.subr.mxu0 0.0
    %1373 = vmatpush1.msra.mxu0 0.0
    %1374 = vmatprep.subr.mxu0 0.0
    %1375 = vmatpush1.msra.mxu0 0.0
    %1376 = vmatprep.subr.mxu0 0.0
    %1377 = vmatpush1.msra.mxu0 0.0
    %1378 = vmatprep.subr.mxu0 0.0
    %1379 = vmatpush1.msra.mxu0 0.0
    %1380 = vmatprep.subr.mxu0 0.0
    %1381 = vmatpush1.msra.mxu0 0.0
    %1382 = vmatprep.mubr.f32.mxu0 0.0
    %1383 = vmatmul.mubr.f32.gmra.mrb[0].mxu0 %v1316
    %v1384 = vpop.f32.mrb[0].mxu0
    %v1385 = vadd.f32 0.0, %v1384
    %v1386 = vpop.f32.mrb[0].mxu0
    %v1387 = vadd.f32 0.0, %v1386
    %1388 = vdwg.mxu0
    %v1389 = vadd.f32 %v1385, %v239
    %v1390 = vadd.f32 %v1387, %v199
    %v1391 = vxor.u32 %v1389, 2147483648
    %v1392 = vmul.f32 %v1391, 1.442695
    %v1393 = vpow.pop %v1392
    %v1394 = vadd.f32 %v1393, 1.0
    %v1395 = vrcp.pop %v1394
    %v1396 = vmul.f32 1.0, %v1395
    %v1397 = vtanh.pop %v1389
    %v1398 = vmul.f32 %v1396, %v1259
    %1400 = vrot.lane.b32.xlu0 %v1397, 64
    %v1401 = vpop.permute.xlu0 %1400
    %v1403 = vmul.f32 %v1396, %v1401
    %1405 = vrot.lane.b32.xlu0 %v1403, 32
    %v1406 = vpop.permute.xlu0 %1405
    %v1408 = vadd.f32 %v1398, %v1406
    %v1409 = vtanh.pop %v1408
    %1411 = vrot.lane.b32.xlu0 %v1409, 64
    %v1412 = vpop.permute.xlu0 %1411
    %v1414 = vmul.f32 %v1396, %v1412
    %v1415 = vxor.u32 %v1390, 2147483648
    %v1416 = vmul.f32 %v1415, 1.442695
    %v1417 = vpow.pop %v1416
    %v1418 = vadd.f32 %v1417, 1.0
    %v1419 = vrcp.pop %v1418
    %v1420 = vmul.f32 1.0, %v1419
    %v1421 = vtanh.pop %v1390
    %v1422 = vmul.f32 %v1420, %v1283
    %1424 = vrot.lane.b32.xlu0 %v1421, 64
    %v1425 = vpop.permute.xlu0 %1424
    %v1427 = vmul.f32 %v1420, %v1425
    %1429 = vrot.lane.b32.xlu0 %v1427, 32
    %v1430 = vpop.permute.xlu0 %1429
    %v1432 = vadd.f32 %v1422, %v1430
    %v1433 = vtanh.pop %v1432
    %1435 = vrot.lane.b32.xlu0 %v1433, 64
    %v1436 = vpop.permute.xlu0 %1435
    %v1438 = vmul.f32 %v1420, %v1436
    %v1439 = vmul.f32 %v1414, %v391
    %1441 = vrot.lane.b32.xlu0 %v1439, 32
    %v1442 = vpop.permute.xlu0 %1441
    %v1444 = vsel %vm105, %v1442, 0.0
    %1445 = vadd.xlane.f32.xlu0 %v1444
    %v1446 = vpop.xlane.xlu0 %1445
    %v1447 = vmul.f32 %v1438, %v402
    %1449 = vrot.lane.b32.xlu0 %v1447, 32
    %v1450 = vpop.permute.xlu0 %1449
    %v1452 = vsel %vm105, %v1450, 0.0
    %1453 = vadd.xlane.f32.xlu0 %v1452
    %v1454 = vpop.xlane.xlu0 %1453
    %vm1455 = vcmask 7168
    %v1456 = vsel %vm1455, %v400, %v552
    %vm1457 = vcmask 15360
    %v1458 = vsel %vm1457, %v1456, %v701
    %vm1459 = vcmask 23552
    %v1460 = vsel %vm1459, %v1458, %v850
    %vm1461 = vcmask 31744
    %v1462 = vsel %vm1461, %v1460, %v999
    %vm1463 = vcmask 39936
    %v1464 = vsel %vm1463, %v1462, %v1148
    %vm1465 = vcmask 48128
    %v1466 = vsel %vm1465, %v1464, %v1297
    %vm1467 = vcmask 56320
    %v1468 = vsel %vm1467, %v1466, %v1446
    %v1469 = vsel %vm1455, %v1454, %v1305
    %v1470 = vsel %vm1457, %v1469, %v1156
    %v1471 = vsel %vm1459, %v1470, %v1007
    %v1472 = vsel %vm1461, %v1471, %v858
    %v1473 = vsel %vm1463, %v1472, %v709
    %v1474 = vsel %vm1465, %v1473, %v560
    %v1475 = vsel %vm1467, %v1474, %v411
    %v1476 = vadd.f32 %v1468, %v1475
    %v1477 = vld [vmem:[#allocation2] sm:$0x1]
    %v1479 = vlaneseq
    %v1480 = vshrl.u32 %v1479, 7
    %v1481 = vsub.s32 0, %v1480
    %v1482 = vrot.slane %v1477, %v1481
    %1483 = vset.pattern.permute.xlu0 0
    %1484 = vperm.xlu0 %1483, %v1482
    %v1485 = vpop.permute.xlu0 %1484
    %v1487 = vadd.f32 %v1476, %v1485
    %v1488 = vxor.u32 %v1487, 2147483648
    %v1489 = vmul.f32 %v1488, 1.442695
    %v1490 = vpow.pop %v1489
    %v1491 = vadd.f32 %v1490, 1.0
    %v1492 = vrcp.pop %v1491
    %v1493 = vmul.f32 1.0, %v1492
    %vm1494 = vcmask 64512
    %1495 = vst.msk [vmem:[#allocation10] sm:$0xff] %vm1494, %v1493
    %v1496 = vld [vmem:[%s6] sm:$0x1]
    %v1498 = vlaneseq
    %v1499 = vshrl.u32 %v1498, 7
    %v1500 = vsub.s32 0, %v1499
    %v1501 = vrot.slane %v1496, %v1500
    %1502 = vrot.lane.b32.xlu0 %v1501, 96
    %v1503 = vpop.permute.xlu0 %1502
    %v1505 = vmul.f32 %v1414, %v1503
    %1507 = vrot.lane.b32.xlu0 %v1505, 32
    %v1508 = vpop.permute.xlu0 %1507
    %v1510 = vsel %vm105, %v1508, 0.0
    %1511 = vadd.xlane.f32.xlu0 %v1510
    %v1512 = vpop.xlane.xlu0 %1511
    %1513 = vrot.lane.b32.xlu0 %v1501, 64
    %v1514 = vpop.permute.xlu0 %1513
    %v1516 = vmul.f32 %v1438, %v1514
    %1518 = vrot.lane.b32.xlu0 %v1516, 32
    %v1519 = vpop.permute.xlu0 %1518
    %v1521 = vsel %vm105, %v1519, 0.0
    %1522 = vadd.xlane.f32.xlu0 %v1521
    %v1523 = vpop.xlane.xlu0 %1522
    %v1524 = vadd.f32 %v1512, %v1523
    %v1525 = vld [vmem:[#allocation3] sm:$0x1]
    %v1527 = vlaneseq
    %v1528 = vshrl.u32 %v1527, 7
    %v1529 = vsub.s32 0, %v1528
    %v1530 = vrot.slane %v1525, %v1529
    %v1532 = vadd.f32 %v1524, %v1530
    %v1533 = vxor.u32 %v1532, 2147483648
    %v1534 = vmul.f32 %v1533, 1.442695
    %v1535 = vpow.pop %v1534
    %v1536 = vadd.f32 %v1535, 1.0
    %v1537 = vrcp.pop %v1536
    %v1538 = vmul.f32 1.0, %v1537
    %1539 = vst.msk [vmem:[%s9] sm:$0xff] %vm1455, %v1538
    // Predicated region
    $region46: #{tpu_custom_call.1} parent=1 // pred_check
      _
    $region47: #{tpu_custom_call.1} parent=1 // pred_check_branch
      %1541 = sbr.rel (0) target = $region49
    $region48: #{tpu_custom_call.1} parent=1 // pred_region
      %s1543 = ssub.s32 128, 128
      %1544 = vsyncadd [#allocation6], %s1543
      %s1546 = sshll.u32 [#allocation10], 4
      %s1547 = int_to_ptr.vmem [resolvable:$true] %s1546
      %1549 = dma.vmem_to_hbm [thread:$0]  %s1547, 128, %s8, [#allocation6]
    $region49: #{tpu_custom_call.1} parent=1 // pred_fallthru
      _
    // Predicated region
    $region50: #{tpu_custom_call.1} parent=1 // pred_check
      _
    $region51: #{tpu_custom_call.1} parent=1 // pred_check_branch
      %1551 = sbr.rel (0) target = $region53
    $region52: #{tpu_custom_call.1} parent=1 // pred_region
      _
    $region53: #{tpu_custom_call.1} parent=1 // pred_fallthru
      _
    // Predicated region
    $region54: #{tpu_custom_call.1} parent=1 // pred_check
      _
    $region55: #{tpu_custom_call.1} parent=1 // pred_check_branch
      %1553 = sbr.rel (0) target = $region57
    $region56: #{tpu_custom_call.1} parent=1 // pred_region
      %1554 = dma.done [#allocation6], 128
    $region57: #{tpu_custom_call.1} parent=1 // pred_fallthru
      _
    // Predicated region
    $region58: #{tpu_custom_call.1} parent=1 // pred_check
      _
    $region59: #{tpu_custom_call.1} parent=1 // pred_check_branch
      %1556 = sbr.rel (0) target = $region61
    $region60: #{tpu_custom_call.1} parent=1 // pred_region
      _
    $region61: #{tpu_custom_call.1} parent=1 // pred_fallthru
      _
    %1557 = vsyncpa [#allocation5], 1
    %1558 = vsyncpa [#allocation8], 1
    %1559 = vsyncpa [#allocation6], 1

</llo_original>
